<compile_context>
chip_gen: v5e
topology: v5e:2x2
jax: 0.10.0
libtpu: 0.0.40
codegen_flags: <defaults>
</compile_context>

<pallas_src>
import functools

import jax
import jax.numpy as jnp
from jax.experimental import pallas as pl
from jax.experimental.pallas import tpu as pltpu

NEG_SLOPE = 0.01          # torch.nn.functional.leaky_relu default negative_slope
HIDDEN = [640, 480, 240, 120]
OUT_FEATURES = 17
BN_EPS = 1e-5
LANE = 128


def _round_up(x, m):
    return (x + m - 1) // m * m


def _leaky_relu(x):
    return jnp.where(x >= 0, x, NEG_SLOPE * x)


def _pad2(a, rows, cols):
    return jnp.pad(a, ((0, rows - a.shape[0]), (0, cols - a.shape[1])))


# --------------------------------------------------------------------------- #
# Kernel: one batch tile through the whole 5-layer MLP + fused pair-softmax.
# --------------------------------------------------------------------------- #
def _mlp_kernel(x_ref,
                w1, b1, w2, b2, w3, b3, w4, b4, w5, b5,
                pair_ref, out_ref):
    def layer(x_bf16, w_ref, b_ref, activate):
        # MXU matmul: bf16 operands (BN already folded into W), f32 accumulation.
        y = jnp.dot(x_bf16, w_ref[...], preferred_element_type=jnp.float32)
        y = y + b_ref[...]                       # f32 bias add on the VPU
        if activate:
            # leaky_relu in f32 (safe on v5e), store activation in bf16.
            return _leaky_relu(y).astype(jnp.bfloat16)
        return y                                 # f32 logits

    x = x_ref[...]                               # bf16 (tile_b, d_in)
    x = layer(x, w1, b1, True)                   # bn1 -> dense1 -> leaky_relu
    x = layer(x, w2, b2, True)                   # bn2 -> (dropout=id) -> dense2
    x = layer(x, w3, b3, True)                   # bn3 -> dense3
    x = layer(x, w4, b4, True)                   # bn4 -> dense4
    logits = layer(x, w5, b5, False)             # bn5 -> dense5 (weight_norm folded)

    # Fused softmax over adjacent lane pairs (2k, 2k+1)  ==  view(-1,17,2),
    # softmax(dim=2).  Row max (padded lanes are exactly 0) is a valid shared
    # stabiliser: the pair softmax only depends on within-pair differences.
    m = jnp.max(logits, axis=-1, keepdims=True)          # XLU reduce
    e = jnp.exp(logits - m)                              # EUP
    # pair-sum via a 0/1 pairing matrix on the MXU: denom[:, j] = e[:,2k]+e[:,2k+1]
    denom = jnp.dot(e.astype(jnp.bfloat16), pair_ref[...],
                    preferred_element_type=jnp.float32)
    out_ref[...] = e * pl.reciprocal(denom, approx=True)  # EUP vrcp


# --------------------------------------------------------------------------- #
# Parameters (deterministic synthetic, matching the module's shapes)
# --------------------------------------------------------------------------- #
def init_params(key, in_features):
    dims = [in_features] + HIDDEN + [2 * OUT_FEATURES]
    bn_dims = [in_features] + HIDDEN  # batch_norm1 .. batch_norm5
    keys = iter(jax.random.split(key, 64))

    bn = []
    for d in bn_dims:
        gamma = jax.random.uniform(next(keys), (d,), jnp.float32, 0.5, 1.5)
        beta = 0.1 * jax.random.normal(next(keys), (d,), jnp.float32)
        rmean = 0.1 * jax.random.normal(next(keys), (d,), jnp.float32)
        rvar = jax.random.uniform(next(keys), (d,), jnp.float32, 0.5, 1.5)
        scale = gamma / jnp.sqrt(rvar + BN_EPS)
        shift = beta - rmean * scale
        bn.append((scale.reshape(1, d), shift.reshape(1, d)))

    lin = []
    for i in range(4):  # dense1 .. dense4
        fan_in, fan_out = dims[i], dims[i + 1]
        bound = 1.0 / float(fan_in) ** 0.5
        w = jax.random.uniform(next(keys), (fan_out, fan_in), jnp.float32,
                               -bound, bound)
        b = jax.random.uniform(next(keys), (fan_out,), jnp.float32, -bound, bound)
        lin.append((w.T, b.reshape(1, fan_out)))

    # dense5 = weight_norm(Linear(120, 34)): weight = g * v / ||v||_row (dim=1)
    fan_in, fan_out = dims[4], dims[5]
    bound = 1.0 / float(fan_in) ** 0.5
    v = jax.random.uniform(next(keys), (fan_out, fan_in), jnp.float32,
                           -bound, bound)
    vnorm = jnp.linalg.norm(v, axis=1, keepdims=True)
    g = vnorm * jax.random.uniform(next(keys), (fan_out, 1), jnp.float32, 0.5, 1.5)
    b5 = jax.random.uniform(next(keys), (fan_out,), jnp.float32, -bound, bound)
    w5 = g * v / vnorm
    lin.append((w5.T, b5.reshape(1, fan_out)))

    return {"bn": bn, "lin": lin}


# --------------------------------------------------------------------------- #
# Forward
# --------------------------------------------------------------------------- #
def mlp_forward(params, input_tensor, labels, tile_b=1024):
    B, in_features = input_tensor.shape
    dims = [in_features] + HIDDEN + [2 * OUT_FEATURES]
    pdims = [_round_up(d, LANE) for d in dims]

    # ---- fold BN (eval) into the linear layers, pad, cast weights to bf16 ----
    #   y = (x*s + t) @ W + b  ==  x @ (diag(s) @ W) + (t @ W + b)
    # Padded weight rows/cols and padded bias lanes are 0, so padded
    # activation lanes stay exactly 0 through every layer.
    flat = []
    for i, ((s, t), (w, b)) in enumerate(zip(params["bn"], params["lin"])):
        d_in, d_out = pdims[i], pdims[i + 1]
        w_fold = s.reshape(-1, 1) * w                 # (d_in, d_out) f32
        b_fold = t @ w + b                            # (1, d_out)  f32
        flat.append(_pad2(w_fold, d_in, d_out).astype(jnp.bfloat16))
        flat.append(_pad2(b_fold, 1, d_out))          # f32
    # pairing matrix for the fused pair-softmax: P[i, j] = 1 iff i//2 == j//2
    idx = jnp.arange(pdims[-1])
    flat.append((idx[:, None] // 2 == idx[None, :] // 2).astype(jnp.bfloat16))

    # ---- batch tiling: large tiles, but never pad past the batch, and keep
    # >=2 grid steps (v7x megacore) whenever the batch allows it. ----
    tile_b = max(8, min(int(tile_b), 1024))
    tile_b = (tile_b // 8) * 8
    tile_b = min(tile_b, _round_up(B, 8))
    half = (_round_up(B, 8) // 2 // 8) * 8
    if half >= 8:
        tile_b = min(tile_b, half)
    padded_b = _round_up(B, tile_b)
    grid = (padded_b // tile_b,)

    # bf16 input (matmul operands are bf16 anyway; halves input HBM traffic)
    x = jnp.pad(input_tensor.astype(jnp.bfloat16),
                ((0, padded_b - B), (0, pdims[0] - in_features)))

    const_map = lambda i: (0, 0)

    def resident(shape):
        # Constant block index -> stays in VMEM; single-buffered (no dead copy).
        return pl.BlockSpec(shape, const_map, pipeline_mode=pl.Buffered(1))

    in_specs = [pl.BlockSpec((tile_b, pdims[0]), lambda i: (i, 0))]
    for i in range(5):
        d_in, d_out = pdims[i], pdims[i + 1]
        in_specs += [resident((d_in, d_out)),   # folded weight (bf16)
                     resident((1, d_out))]      # folded bias   (f32)
    in_specs.append(resident((pdims[-1], pdims[-1])))   # pairing matrix
    out_spec = pl.BlockSpec((tile_b, pdims[-1]), lambda i: (i, 0))

    mm_params = sum(pdims[i] * pdims[i + 1] for i in range(5)) + pdims[-1] ** 2
    cost = pl.CostEstimate(
        flops=2 * padded_b * mm_params,
        transcendentals=padded_b * pdims[-1],                    # exp
        bytes_accessed=(padded_b * pdims[0] * 2                  # bf16 input
                        + padded_b * pdims[-1] * 4               # f32 probs out
                        + mm_params * 2                          # bf16 weights
                        + sum(pdims[1:]) * 4),                   # f32 biases
    )

    probs_padded = pl.pallas_call(
        _mlp_kernel,
        out_shape=jax.ShapeDtypeStruct((padded_b, pdims[-1]), jnp.float32),
        grid=grid,
        in_specs=in_specs,
        out_specs=out_spec,
        compiler_params=pltpu.CompilerParams(
            dimension_semantics=("parallel",),      # megacore on v7x
            vmem_limit_bytes=32 * 1024 * 1024,      # headroom on v7x's 64 MiB
        ),
        cost_estimate=cost,
    )(x, *flat)

    probs = probs_padded[:B, :2 * OUT_FEATURES].reshape(-1, OUT_FEATURES, 2)

    # CrossEntropyLoss applied to the softmax *probabilities* — faithful to
    # the PyTorch module (log_softmax of a softmax; likely a modeling bug in
    # the original, reproduced intentionally).
    p2 = probs.reshape(-1, 2)
    t = labels.reshape(-1)
    logp = jax.nn.log_softmax(p2, axis=-1)
    loss = -jnp.mean(jnp.take_along_axis(logp, t[:, None], axis=1)[:, 0])
    return probs, loss


# Pure-JAX f32 reference for a sanity check.
def mlp_reference(params, input_tensor, labels):
    x = input_tensor.astype(jnp.float32)
    n = len(params["lin"])
    for i, ((s, t), (w, b)) in enumerate(zip(params["bn"], params["lin"])):
        x = x * s + t
        x = jnp.dot(x, w) + b
        if i < n - 1:
            x = _leaky_relu(x)
    probs = jax.nn.softmax(x.reshape(-1, OUT_FEATURES, 2), axis=2)
    p2 = probs.reshape(-1, 2)
    t = labels.reshape(-1)
    logp = jax.nn.log_softmax(p2, axis=-1)
    loss = -jnp.mean(jnp.take_along_axis(logp, t[:, None], axis=1)[:, 0])
    return probs, loss


if __name__ == "__main__":
    key = jax.random.PRNGKey(0)
    k_param, k_x, k_lab = jax.random.split(key, 3)

    # Small shapes: in_features is a constructor argument -> pick 256;
    # hidden sizes / out_features are fixed by the module.
    batch, in_features = 32, 256
    params = init_params(k_param, in_features)
    input_tensor = jax.random.normal(k_x, (batch, in_features), jnp.float32)
    labels = jax.random.randint(k_lab, (batch, OUT_FEATURES), 0, 2, jnp.int32)

    # Default tile_b=1024 is auto-capped to 16 here (half of the 8-aligned
    # batch), so the 1-D "parallel" batch grid has 2 steps even at this size.
    fwd = jax.jit(functools.partial(mlp_forward))
    probs, loss = fwd(params, input_tensor, labels)
    jax.block_until_ready((probs, loss))

    # Sanity check vs pure-JAX f32 reference (loose tol: bf16 MXU matmuls,
    # bf16 inter-layer activations, approx reciprocal in the fused softmax).
    ref_probs, ref_loss = jax.jit(mlp_reference)(params, input_tensor, labels)
    assert probs.shape == (batch, OUT_FEATURES, 2)
    assert loss.shape == ()
    assert float(jnp.max(jnp.abs(probs - ref_probs))) < 5e-2
    assert float(jnp.abs(loss - ref_loss)) < 5e-2
    print("KERNEL_OK")
</pallas_src>

<mosaic_0001>
module attributes {stable_mosaic.version = 11 : i64} {
  func.func @_mlp_kernel(%arg0: i32, %arg1: memref<16x256xbf16, #tpu.memory_space<vmem>>, %arg2: memref<256x640xbf16, #tpu.memory_space<vmem>>, %arg3: memref<1x640xf32, #tpu.memory_space<vmem>>, %arg4: memref<640x512xbf16, #tpu.memory_space<vmem>>, %arg5: memref<1x512xf32, #tpu.memory_space<vmem>>, %arg6: memref<512x256xbf16, #tpu.memory_space<vmem>>, %arg7: memref<1x256xf32, #tpu.memory_space<vmem>>, %arg8: memref<256x128xbf16, #tpu.memory_space<vmem>>, %arg9: memref<1x128xf32, #tpu.memory_space<vmem>>, %arg10: memref<128x128xbf16, #tpu.memory_space<vmem>>, %arg11: memref<1x128xf32, #tpu.memory_space<vmem>>, %arg12: memref<128x128xbf16, #tpu.memory_space<vmem>>, %arg13: memref<16x128xf32, #tpu.memory_space<vmem>>) attributes {dimension_semantics = [#tpu.dimension_semantics<parallel>], iteration_bounds = array<i64: 2>, scalar_prefetch = 0 : i64, scratch_operands = 0 : i64, tpu.core_type = #tpu.core_type<tc>, window_params = [{transform_indices = @transform_0, window_bounds = array<i64: 16, 256>}, {pipeline_mode = #tpu.pipeline_mode<synchronous>, transform_indices = @transform_1, window_bounds = array<i64: 256, 640>}, {pipeline_mode = #tpu.pipeline_mode<synchronous>, transform_indices = @transform_2, window_bounds = array<i64: 1, 640>}, {pipeline_mode = #tpu.pipeline_mode<synchronous>, transform_indices = @transform_3, window_bounds = array<i64: 640, 512>}, {pipeline_mode = #tpu.pipeline_mode<synchronous>, transform_indices = @transform_4, window_bounds = array<i64: 1, 512>}, {pipeline_mode = #tpu.pipeline_mode<synchronous>, transform_indices = @transform_5, window_bounds = array<i64: 512, 256>}, {pipeline_mode = #tpu.pipeline_mode<synchronous>, transform_indices = @transform_6, window_bounds = array<i64: 1, 256>}, {pipeline_mode = #tpu.pipeline_mode<synchronous>, transform_indices = @transform_7, window_bounds = array<i64: 256, 128>}, {pipeline_mode = #tpu.pipeline_mode<synchronous>, transform_indices = @transform_8, window_bounds = array<i64: 1, 128>}, {pipeline_mode = #tpu.pipeline_mode<synchronous>, transform_indices = @transform_9, window_bounds = array<i64: 128, 128>}, {pipeline_mode = #tpu.pipeline_mode<synchronous>, transform_indices = @transform_10, window_bounds = array<i64: 1, 128>}, {pipeline_mode = #tpu.pipeline_mode<synchronous>, transform_indices = @transform_11, window_bounds = array<i64: 128, 128>}, {transform_indices = @transform_12, window_bounds = array<i64: 16, 128>}]} {
    %c0 = arith.constant 0 : index
    %c0_0 = arith.constant 0 : index
    %0 = vector.load %arg1[%c0, %c0_0] : memref<16x256xbf16, #tpu.memory_space<vmem>>, vector<16x256xbf16>
    %c0_1 = arith.constant 0 : index
    %c0_2 = arith.constant 0 : index
    %1 = vector.load %arg2[%c0_1, %c0_2] : memref<256x640xbf16, #tpu.memory_space<vmem>>, vector<256x640xbf16>
    %cst = arith.constant dense<0.000000e+00> : vector<16x640xf32>
    %2 = tpu.matmul %0, %1, %cst {dimension_numbers = #tpu.dot_dimension_numbers<[1], [0], [0], [1], [0, 0, 1, 1], [], []>} : vector<16x256xbf16>, vector<256x640xbf16>, vector<16x640xf32> -> vector<16x640xf32>
    %c0_3 = arith.constant 0 : index
    %c0_4 = arith.constant 0 : index
    %3 = vector.load %arg3[%c0_3, %c0_4] : memref<1x640xf32, #tpu.memory_space<vmem>>, vector<1x640xf32>
    %4 = vector.broadcast %3 : vector<1x640xf32> to vector<16x640xf32>
    %5 = arith.addf %2, %4 : vector<16x640xf32>
    %cst_5 = arith.constant 0.000000e+00 : f32
    %6 = vector.broadcast %cst_5 : f32 to vector<16x640xf32>
    %7 = arith.cmpf oge, %5, %6 : vector<16x640xf32>
    %cst_6 = arith.constant 0.00999999977 : f32
    %8 = vector.broadcast %cst_6 : f32 to vector<16x640xf32>
    %9 = arith.mulf %8, %5 : vector<16x640xf32>
    %10 = arith.select %7, %5, %9 : vector<16x640xi1>, vector<16x640xf32>
    %11 = arith.truncf %10 : vector<16x640xf32> to vector<16x640xbf16>
    %c0_7 = arith.constant 0 : index
    %c0_8 = arith.constant 0 : index
    %12 = vector.load %arg4[%c0_7, %c0_8] : memref<640x512xbf16, #tpu.memory_space<vmem>>, vector<640x512xbf16>
    %cst_9 = arith.constant dense<0.000000e+00> : vector<16x512xf32>
    %13 = tpu.matmul %11, %12, %cst_9 {dimension_numbers = #tpu.dot_dimension_numbers<[1], [0], [0], [1], [0, 0, 1, 1], [], []>} : vector<16x640xbf16>, vector<640x512xbf16>, vector<16x512xf32> -> vector<16x512xf32>
    %c0_10 = arith.constant 0 : index
    %c0_11 = arith.constant 0 : index
    %14 = vector.load %arg5[%c0_10, %c0_11] : memref<1x512xf32, #tpu.memory_space<vmem>>, vector<1x512xf32>
    %15 = vector.broadcast %14 : vector<1x512xf32> to vector<16x512xf32>
    %16 = arith.addf %13, %15 : vector<16x512xf32>
    %cst_12 = arith.constant 0.000000e+00 : f32
    %17 = vector.broadcast %cst_12 : f32 to vector<16x512xf32>
    %18 = arith.cmpf oge, %16, %17 : vector<16x512xf32>
    %cst_13 = arith.constant 0.00999999977 : f32
    %19 = vector.broadcast %cst_13 : f32 to vector<16x512xf32>
    %20 = arith.mulf %19, %16 : vector<16x512xf32>
    %21 = arith.select %18, %16, %20 : vector<16x512xi1>, vector<16x512xf32>
    %22 = arith.truncf %21 : vector<16x512xf32> to vector<16x512xbf16>
    %c0_14 = arith.constant 0 : index
    %c0_15 = arith.constant 0 : index
    %23 = vector.load %arg6[%c0_14, %c0_15] : memref<512x256xbf16, #tpu.memory_space<vmem>>, vector<512x256xbf16>
    %cst_16 = arith.constant dense<0.000000e+00> : vector<16x256xf32>
    %24 = tpu.matmul %22, %23, %cst_16 {dimension_numbers = #tpu.dot_dimension_numbers<[1], [0], [0], [1], [0, 0, 1, 1], [], []>} : vector<16x512xbf16>, vector<512x256xbf16>, vector<16x256xf32> -> vector<16x256xf32>
    %c0_17 = arith.constant 0 : index
    %c0_18 = arith.constant 0 : index
    %25 = vector.load %arg7[%c0_17, %c0_18] : memref<1x256xf32, #tpu.memory_space<vmem>>, vector<1x256xf32>
    %26 = vector.broadcast %25 : vector<1x256xf32> to vector<16x256xf32>
    %27 = arith.addf %24, %26 : vector<16x256xf32>
    %cst_19 = arith.constant 0.000000e+00 : f32
    %28 = vector.broadcast %cst_19 : f32 to vector<16x256xf32>
    %29 = arith.cmpf oge, %27, %28 : vector<16x256xf32>
    %cst_20 = arith.constant 0.00999999977 : f32
    %30 = vector.broadcast %cst_20 : f32 to vector<16x256xf32>
    %31 = arith.mulf %30, %27 : vector<16x256xf32>
    %32 = arith.select %29, %27, %31 : vector<16x256xi1>, vector<16x256xf32>
    %33 = arith.truncf %32 : vector<16x256xf32> to vector<16x256xbf16>
    %c0_21 = arith.constant 0 : index
    %c0_22 = arith.constant 0 : index
    %34 = vector.load %arg8[%c0_21, %c0_22] : memref<256x128xbf16, #tpu.memory_space<vmem>>, vector<256x128xbf16>
    %cst_23 = arith.constant dense<0.000000e+00> : vector<16x128xf32>
    %35 = tpu.matmul %33, %34, %cst_23 {dimension_numbers = #tpu.dot_dimension_numbers<[1], [0], [0], [1], [0, 0, 1, 1], [], []>} : vector<16x256xbf16>, vector<256x128xbf16>, vector<16x128xf32> -> vector<16x128xf32>
    %c0_24 = arith.constant 0 : index
    %c0_25 = arith.constant 0 : index
    %36 = vector.load %arg9[%c0_24, %c0_25] : memref<1x128xf32, #tpu.memory_space<vmem>>, vector<1x128xf32>
    %37 = vector.broadcast %36 : vector<1x128xf32> to vector<16x128xf32>
    %38 = arith.addf %35, %37 : vector<16x128xf32>
    %cst_26 = arith.constant 0.000000e+00 : f32
    %39 = vector.broadcast %cst_26 : f32 to vector<16x128xf32>
    %40 = arith.cmpf oge, %38, %39 : vector<16x128xf32>
    %cst_27 = arith.constant 0.00999999977 : f32
    %41 = vector.broadcast %cst_27 : f32 to vector<16x128xf32>
    %42 = arith.mulf %41, %38 : vector<16x128xf32>
    %43 = arith.select %40, %38, %42 : vector<16x128xi1>, vector<16x128xf32>
    %44 = arith.truncf %43 : vector<16x128xf32> to vector<16x128xbf16>
    %c0_28 = arith.constant 0 : index
    %c0_29 = arith.constant 0 : index
    %45 = vector.load %arg10[%c0_28, %c0_29] : memref<128x128xbf16, #tpu.memory_space<vmem>>, vector<128x128xbf16>
    %cst_30 = arith.constant dense<0.000000e+00> : vector<16x128xf32>
    %46 = tpu.matmul %44, %45, %cst_30 {dimension_numbers = #tpu.dot_dimension_numbers<[1], [0], [0], [1], [0, 0, 1, 1], [], []>} : vector<16x128xbf16>, vector<128x128xbf16>, vector<16x128xf32> -> vector<16x128xf32>
    %c0_31 = arith.constant 0 : index
    %c0_32 = arith.constant 0 : index
    %47 = vector.load %arg11[%c0_31, %c0_32] : memref<1x128xf32, #tpu.memory_space<vmem>>, vector<1x128xf32>
    %48 = vector.broadcast %47 : vector<1x128xf32> to vector<16x128xf32>
    %49 = arith.addf %46, %48 : vector<16x128xf32>
    %cst_33 = arith.constant dense<0xFF800000> : vector<16xf32>
    %50 = vector.multi_reduction <maximumf>, %49, %cst_33 [1] : vector<16x128xf32> to vector<16xf32>
    %51 = vector.shape_cast %50 : vector<16xf32> to vector<16x1xf32>
    %52 = vector.broadcast %51 : vector<16x1xf32> to vector<16x128xf32>
    %53 = arith.subf %49, %52 : vector<16x128xf32>
    %54 = math.exp %53 : vector<16x128xf32>
    %55 = arith.truncf %54 : vector<16x128xf32> to vector<16x128xbf16>
    %c0_34 = arith.constant 0 : index
    %c0_35 = arith.constant 0 : index
    %56 = vector.load %arg12[%c0_34, %c0_35] : memref<128x128xbf16, #tpu.memory_space<vmem>>, vector<128x128xbf16>
    %cst_36 = arith.constant dense<0.000000e+00> : vector<16x128xf32>
    %57 = tpu.matmul %55, %56, %cst_36 {dimension_numbers = #tpu.dot_dimension_numbers<[1], [0], [0], [1], [0, 0, 1, 1], [], []>} : vector<16x128xbf16>, vector<128x128xbf16>, vector<16x128xf32> -> vector<16x128xf32>
    %58 = tpu.reciprocal %57 {approx = true} : vector<16x128xf32> -> vector<16x128xf32>
    %59 = arith.mulf %54, %58 : vector<16x128xf32>
    %c0_37 = arith.constant 0 : index
    %c0_38 = arith.constant 0 : index
    %60 = vector.load %arg13[%c0_37, %c0_38] : memref<16x128xf32, #tpu.memory_space<vmem>>, vector<16x128xf32>
    tpu.vector_store %arg13[%c0_37, %c0_38], %59 {strides = array<i32>} : memref<16x128xf32, #tpu.memory_space<vmem>>, vector<16x128xf32>,
    return
  }
  func.func @transform_0(%arg0: i32) -> (i32, i32) {
    %c0_i32 = arith.constant 0 : i32
    %c0_i32_0 = arith.constant 0 : i32
    return %arg0, %c0_i32 : i32, i32
  }
  func.func @transform_1(%arg0: i32) -> (i32, i32) {
    %c0_i32 = arith.constant 0 : i32
    %c0_i32_0 = arith.constant 0 : i32
    %c0_i32_1 = arith.constant 0 : i32
    return %c0_i32, %c0_i32_0 : i32, i32
  }
  func.func @transform_2(%arg0: i32) -> (i32, i32) {
    %c0_i32 = arith.constant 0 : i32
    %c0_i32_0 = arith.constant 0 : i32
    %c0_i32_1 = arith.constant 0 : i32
    return %c0_i32, %c0_i32_0 : i32, i32
  }
  func.func @transform_3(%arg0: i32) -> (i32, i32) {
    %c0_i32 = arith.constant 0 : i32
    %c0_i32_0 = arith.constant 0 : i32
    %c0_i32_1 = arith.constant 0 : i32
    return %c0_i32, %c0_i32_0 : i32, i32
  }
  func.func @transform_4(%arg0: i32) -> (i32, i32) {
    %c0_i32 = arith.constant 0 : i32
    %c0_i32_0 = arith.constant 0 : i32
    %c0_i32_1 = arith.constant 0 : i32
    return %c0_i32, %c0_i32_0 : i32, i32
  }
  func.func @transform_5(%arg0: i32) -> (i32, i32) {
    %c0_i32 = arith.constant 0 : i32
    %c0_i32_0 = arith.constant 0 : i32
    %c0_i32_1 = arith.constant 0 : i32
    return %c0_i32, %c0_i32_0 : i32, i32
  }
  func.func @transform_6(%arg0: i32) -> (i32, i32) {
    %c0_i32 = arith.constant 0 : i32
    %c0_i32_0 = arith.constant 0 : i32
    %c0_i32_1 = arith.constant 0 : i32
    return %c0_i32, %c0_i32_0 : i32, i32
  }
  func.func @transform_7(%arg0: i32) -> (i32, i32) {
    %c0_i32 = arith.constant 0 : i32
    %c0_i32_0 = arith.constant 0 : i32
    %c0_i32_1 = arith.constant 0 : i32
    return %c0_i32, %c0_i32_0 : i32, i32
  }
  func.func @transform_8(%arg0: i32) -> (i32, i32) {
    %c0_i32 = arith.constant 0 : i32
    %c0_i32_0 = arith.constant 0 : i32
    %c0_i32_1 = arith.constant 0 : i32
    return %c0_i32, %c0_i32_0 : i32, i32
  }
  func.func @transform_9(%arg0: i32) -> (i32, i32) {
    %c0_i32 = arith.constant 0 : i32
    %c0_i32_0 = arith.constant 0 : i32
    %c0_i32_1 = arith.constant 0 : i32
    return %c0_i32, %c0_i32_0 : i32, i32
  }
  func.func @transform_10(%arg0: i32) -> (i32, i32) {
    %c0_i32 = arith.constant 0 : i32
    %c0_i32_0 = arith.constant 0 : i32
    %c0_i32_1 = arith.constant 0 : i32
    return %c0_i32, %c0_i32_0 : i32, i32
  }
  func.func @transform_11(%arg0: i32) -> (i32, i32) {
    %c0_i32 = arith.constant 0 : i32
    %c0_i32_0 = arith.constant 0 : i32
    %c0_i32_1 = arith.constant 0 : i32
    return %c0_i32, %c0_i32_0 : i32, i32
  }
  func.func @transform_12(%arg0: i32) -> (i32, i32) {
    %c0_i32 = arith.constant 0 : i32
    %c0_i32_0 = arith.constant 0 : i32
    return %arg0, %c0_i32 : i32, i32
  }
}

</mosaic_0001>

<llo_original>
// kernel: mlp_forward.1
$region0: #{mlp_forward.1}
  #allocation0 [shape = 'u32[]', space=smem, size = 0x4, offset = 0x4, fixed_abs, tag = 'smem constant byte address 0x4 - core index']
  #allocation1 [shape = 'u32[72,128]{1,0:T(1,128)}', space=vmem, size = 0x9000, scoped, tag = 'internal scratch']
  %s0 = inlined_call_operand.vmem [shape: bf16[32,256], index: 0, kind: input, shape index: {}]
  %s1 = inlined_call_operand.vmem [shape: bf16[256,640], index: 1, kind: input, shape index: {}]
  %s2 = inlined_call_operand.vmem [shape: f32[1,640], index: 2, kind: input, shape index: {}]
  %s3 = inlined_call_operand.vmem [shape: bf16[640,512], index: 3, kind: input, shape index: {}]
  %s4 = inlined_call_operand.vmem [shape: f32[1,512], index: 4, kind: input, shape index: {}]
  %s5 = inlined_call_operand.vmem [shape: bf16[512,256], index: 5, kind: input, shape index: {}]
  %s6 = inlined_call_operand.vmem [shape: f32[1,256], index: 6, kind: input, shape index: {}]
  %s7 = inlined_call_operand.vmem [shape: bf16[256,128], index: 7, kind: input, shape index: {}]
  %s8 = inlined_call_operand.vmem [shape: f32[1,128], index: 8, kind: input, shape index: {}]
  %s9 = inlined_call_operand.vmem [shape: bf16[128,128], index: 9, kind: input, shape index: {}]
  %s10 = inlined_call_operand.vmem [shape: f32[1,128], index: 10, kind: input, shape index: {}]
  %s11 = inlined_call_operand.vmem [shape: bf16[128,128], index: 11, kind: input, shape index: {}]
  %s12 = inlined_call_operand.vmem [shape: f32[32,128], index: 12, kind: output, shape index: {}]
  %s13 = sld [smem:[#allocation0]]
  $region81: #{mlp_forward.1} parent=0
    _
  %s15 = ssub.s32 1, %s13
  %s16 = scalar_select 0, %s15, %s13
  loop: start=0, step=1, limit=4
  $region2: #{mlp_forward.1} parent=0 // loop_pre_header
    _
  $region3: #{mlp_forward.1} parent=0 // loop_header
    %s18 = sphi 0, %s22
    %p19 = scmp.ge.s32.totalorder %s18, 4
    %s28 = sphi 0, %s30
    %s31 = sphi 0, %s28
    %s32 = sphi 0, %s31
    %s48 = sphi 0, %s32
    %s52 = sphi 0, %s52
    %s54 = sphi 0, %s52
    %s55 = sphi 0, %s54
    %s69 = sphi 0, %s55
    %s73 = sphi 0, %s73
    %s75 = sphi 0, %s73
    %s76 = sphi 0, %s75
    %s90 = sphi 0, %s76
    %s94 = sphi 0, %s94
    %s96 = sphi 0, %s94
    %s97 = sphi 0, %s96
    %s111 = sphi 0, %s97
    %s115 = sphi 0, %s115
    %s117 = sphi 0, %s115
    %s118 = sphi 0, %s117
    %s132 = sphi 0, %s118
    %s136 = sphi 0, %s136
    %s138 = sphi 0, %s136
    %s139 = sphi 0, %s138
    %s153 = sphi 0, %s139
    %s157 = sphi 0, %s157
    %s159 = sphi 0, %s157
    %s160 = sphi 0, %s159
    %s174 = sphi 0, %s160
    %s178 = sphi 0, %s178
    %s180 = sphi 0, %s178
    %s181 = sphi 0, %s180
    %s195 = sphi 0, %s181
    %s199 = sphi 0, %s199
    %s201 = sphi 0, %s199
    %s202 = sphi 0, %s201
    %s216 = sphi 0, %s202
    %s220 = sphi 0, %s220
    %s222 = sphi 0, %s220
    %s223 = sphi 0, %s222
    %s237 = sphi 0, %s223
    %s241 = sphi 0, %s241
    %s243 = sphi 0, %s241
    %s244 = sphi 0, %s243
    %s258 = sphi 0, %s244
    %s262 = sphi 0, %s262
    %s264 = sphi 0, %s262
    %s265 = sphi 0, %s264
    %s279 = sphi 0, %s265
    %s285 = sphi 0, %s287
    %s288 = sphi 0, %s285
    %s289 = sphi 0, %s288
    %s305 = sphi 0, %s289
  $region4: #{mlp_forward.1} parent=0 // loop_header_branch
    %21 = sbr.rel (%p19) target = $region8
  $region5: #{mlp_forward.1} parent=0 // loop_body
    %s23 = ssub.s32 %s18, 1
    %s24 = ssub.s32 %s18, 2
    %s25 = sadd.s32 %s18, 1
    %s26 = ssub.s32 %s18, %s25
    %p27 = scmp.eq.s32.totalorder %s26, 0
    %s29 = sadd.s32 %s28, 1
    %s30 = scalar_select %p27, %s28, %s29
    %p33 = pneg %p27
    %p34 = scmp.eq.s32.totalorder %s18, 1
    %p35 = por %p33, %p34
    %p36 = scmp.ne.s32.totalorder %s28, %s31
    %p37 = scmp.eq.s32.totalorder %s18, 0
    %p38 = por %p36, %p37
    %p39 = scmp.ne.s32.totalorder %s28, %s31
    %p40 = scmp.eq.s32.totalorder %s23, 1
    %p41 = por %p39, %p40
    %p42 = scmp.ne.s32.totalorder %s31, %s32
    %p43 = scmp.eq.s32.totalorder %s23, 0
    %p44 = por %p42, %p43
    %p45 = scmp.ne.s32.totalorder %s31, %s32
    %p46 = scmp.eq.s32.totalorder %s24, 1
    %p47 = por %p45, %p46
    %p49 = scmp.ne.s32.totalorder %s32, %s48
    %p50 = scmp.eq.s32.totalorder %s24, 0
    %p51 = por %p49, %p50
    %s53 = sadd.s32 %s52, 1
    %p56 = scmp.eq.s32.totalorder %s18, 1
    %p57 = scmp.ne.s32.totalorder %s52, %s54
    %p58 = scmp.eq.s32.totalorder %s18, 0
    %p59 = por %p57, %p58
    %p60 = scmp.ne.s32.totalorder %s52, %s54
    %p61 = scmp.eq.s32.totalorder %s23, 1
    %p62 = por %p60, %p61
    %p63 = scmp.ne.s32.totalorder %s54, %s55
    %p64 = scmp.eq.s32.totalorder %s23, 0
    %p65 = por %p63, %p64
    %p66 = scmp.ne.s32.totalorder %s54, %s55
    %p67 = scmp.eq.s32.totalorder %s24, 1
    %p68 = por %p66, %p67
    %p70 = scmp.ne.s32.totalorder %s55, %s69
    %p71 = scmp.eq.s32.totalorder %s24, 0
    %p72 = por %p70, %p71
    %s74 = sadd.s32 %s73, 1
    %p77 = scmp.eq.s32.totalorder %s18, 1
    %p78 = scmp.ne.s32.totalorder %s73, %s75
    %p79 = scmp.eq.s32.totalorder %s18, 0
    %p80 = por %p78, %p79
    %p81 = scmp.ne.s32.totalorder %s73, %s75
    %p82 = scmp.eq.s32.totalorder %s23, 1
    %p83 = por %p81, %p82
    %p84 = scmp.ne.s32.totalorder %s75, %s76
    %p85 = scmp.eq.s32.totalorder %s23, 0
    %p86 = por %p84, %p85
    %p87 = scmp.ne.s32.totalorder %s75, %s76
    %p88 = scmp.eq.s32.totalorder %s24, 1
    %p89 = por %p87, %p88
    %p91 = scmp.ne.s32.totalorder %s76, %s90
    %p92 = scmp.eq.s32.totalorder %s24, 0
    %p93 = por %p91, %p92
    %s95 = sadd.s32 %s94, 1
    %p98 = scmp.eq.s32.totalorder %s18, 1
    %p99 = scmp.ne.s32.totalorder %s94, %s96
    %p100 = scmp.eq.s32.totalorder %s18, 0
    %p101 = por %p99, %p100
    %p102 = scmp.ne.s32.totalorder %s94, %s96
    %p103 = scmp.eq.s32.totalorder %s23, 1
    %p104 = por %p102, %p103
    %p105 = scmp.ne.s32.totalorder %s96, %s97
    %p106 = scmp.eq.s32.totalorder %s23, 0
    %p107 = por %p105, %p106
    %p108 = scmp.ne.s32.totalorder %s96, %s97
    %p109 = scmp.eq.s32.totalorder %s24, 1
    %p110 = por %p108, %p109
    %p112 = scmp.ne.s32.totalorder %s97, %s111
    %p113 = scmp.eq.s32.totalorder %s24, 0
    %p114 = por %p112, %p113
    %s116 = sadd.s32 %s115, 1
    %p119 = scmp.eq.s32.totalorder %s18, 1
    %p120 = scmp.ne.s32.totalorder %s115, %s117
    %p121 = scmp.eq.s32.totalorder %s18, 0
    %p122 = por %p120, %p121
    %p123 = scmp.ne.s32.totalorder %s115, %s117
    %p124 = scmp.eq.s32.totalorder %s23, 1
    %p125 = por %p123, %p124
    %p126 = scmp.ne.s32.totalorder %s117, %s118
    %p127 = scmp.eq.s32.totalorder %s23, 0
    %p128 = por %p126, %p127
    %p129 = scmp.ne.s32.totalorder %s117, %s118
    %p130 = scmp.eq.s32.totalorder %s24, 1
    %p131 = por %p129, %p130
    %p133 = scmp.ne.s32.totalorder %s118, %s132
    %p134 = scmp.eq.s32.totalorder %s24, 0
    %p135 = por %p133, %p134
    %s137 = sadd.s32 %s136, 1
    %p140 = scmp.eq.s32.totalorder %s18, 1
    %p141 = scmp.ne.s32.totalorder %s136, %s138
    %p142 = scmp.eq.s32.totalorder %s18, 0
    %p143 = por %p141, %p142
    %p144 = scmp.ne.s32.totalorder %s136, %s138
    %p145 = scmp.eq.s32.totalorder %s23, 1
    %p146 = por %p144, %p145
    %p147 = scmp.ne.s32.totalorder %s138, %s139
    %p148 = scmp.eq.s32.totalorder %s23, 0
    %p149 = por %p147, %p148
    %p150 = scmp.ne.s32.totalorder %s138, %s139
    %p151 = scmp.eq.s32.totalorder %s24, 1
    %p152 = por %p150, %p151
    %p154 = scmp.ne.s32.totalorder %s139, %s153
    %p155 = scmp.eq.s32.totalorder %s24, 0
    %p156 = por %p154, %p155
    %s158 = sadd.s32 %s157, 1
    %p161 = scmp.eq.s32.totalorder %s18, 1
    %p162 = scmp.ne.s32.totalorder %s157, %s159
    %p163 = scmp.eq.s32.totalorder %s18, 0
    %p164 = por %p162, %p163
    %p165 = scmp.ne.s32.totalorder %s157, %s159
    %p166 = scmp.eq.s32.totalorder %s23, 1
    %p167 = por %p165, %p166
    %p168 = scmp.ne.s32.totalorder %s159, %s160
    %p169 = scmp.eq.s32.totalorder %s23, 0
    %p170 = por %p168, %p169
    %p171 = scmp.ne.s32.totalorder %s159, %s160
    %p172 = scmp.eq.s32.totalorder %s24, 1
    %p173 = por %p171, %p172
    %p175 = scmp.ne.s32.totalorder %s160, %s174
    %p176 = scmp.eq.s32.totalorder %s24, 0
    %p177 = por %p175, %p176
    %s179 = sadd.s32 %s178, 1
    %p182 = scmp.eq.s32.totalorder %s18, 1
    %p183 = scmp.ne.s32.totalorder %s178, %s180
    %p184 = scmp.eq.s32.totalorder %s18, 0
    %p185 = por %p183, %p184
    %p186 = scmp.ne.s32.totalorder %s178, %s180
    %p187 = scmp.eq.s32.totalorder %s23, 1
    %p188 = por %p186, %p187
    %p189 = scmp.ne.s32.totalorder %s180, %s181
    %p190 = scmp.eq.s32.totalorder %s23, 0
    %p191 = por %p189, %p190
    %p192 = scmp.ne.s32.totalorder %s180, %s181
    %p193 = scmp.eq.s32.totalorder %s24, 1
    %p194 = por %p192, %p193
    %p196 = scmp.ne.s32.totalorder %s181, %s195
    %p197 = scmp.eq.s32.totalorder %s24, 0
    %p198 = por %p196, %p197
    %s200 = sadd.s32 %s199, 1
    %p203 = scmp.eq.s32.totalorder %s18, 1
    %p204 = scmp.ne.s32.totalorder %s199, %s201
    %p205 = scmp.eq.s32.totalorder %s18, 0
    %p206 = por %p204, %p205
    %p207 = scmp.ne.s32.totalorder %s199, %s201
    %p208 = scmp.eq.s32.totalorder %s23, 1
    %p209 = por %p207, %p208
    %p210 = scmp.ne.s32.totalorder %s201, %s202
    %p211 = scmp.eq.s32.totalorder %s23, 0
    %p212 = por %p210, %p211
    %p213 = scmp.ne.s32.totalorder %s201, %s202
    %p214 = scmp.eq.s32.totalorder %s24, 1
    %p215 = por %p213, %p214
    %p217 = scmp.ne.s32.totalorder %s202, %s216
    %p218 = scmp.eq.s32.totalorder %s24, 0
    %p219 = por %p217, %p218
    %s221 = sadd.s32 %s220, 1
    %p224 = scmp.eq.s32.totalorder %s18, 1
    %p225 = scmp.ne.s32.totalorder %s220, %s222
    %p226 = scmp.eq.s32.totalorder %s18, 0
    %p227 = por %p225, %p226
    %p228 = scmp.ne.s32.totalorder %s220, %s222
    %p229 = scmp.eq.s32.totalorder %s23, 1
    %p230 = por %p228, %p229
    %p231 = scmp.ne.s32.totalorder %s222, %s223
    %p232 = scmp.eq.s32.totalorder %s23, 0
    %p233 = por %p231, %p232
    %p234 = scmp.ne.s32.totalorder %s222, %s223
    %p235 = scmp.eq.s32.totalorder %s24, 1
    %p236 = por %p234, %p235
    %p238 = scmp.ne.s32.totalorder %s223, %s237
    %p239 = scmp.eq.s32.totalorder %s24, 0
    %p240 = por %p238, %p239
    %s242 = sadd.s32 %s241, 1
    %p245 = scmp.eq.s32.totalorder %s18, 1
    %p246 = scmp.ne.s32.totalorder %s241, %s243
    %p247 = scmp.eq.s32.totalorder %s18, 0
    %p248 = por %p246, %p247
    %p249 = scmp.ne.s32.totalorder %s241, %s243
    %p250 = scmp.eq.s32.totalorder %s23, 1
    %p251 = por %p249, %p250
    %p252 = scmp.ne.s32.totalorder %s243, %s244
    %p253 = scmp.eq.s32.totalorder %s23, 0
    %p254 = por %p252, %p253
    %p255 = scmp.ne.s32.totalorder %s243, %s244
    %p256 = scmp.eq.s32.totalorder %s24, 1
    %p257 = por %p255, %p256
    %p259 = scmp.ne.s32.totalorder %s244, %s258
    %p260 = scmp.eq.s32.totalorder %s24, 0
    %p261 = por %p259, %p260
    %s263 = sadd.s32 %s262, 1
    %p266 = scmp.eq.s32.totalorder %s18, 1
    %p267 = scmp.ne.s32.totalorder %s262, %s264
    %p268 = scmp.eq.s32.totalorder %s18, 0
    %p269 = por %p267, %p268
    %p270 = scmp.ne.s32.totalorder %s262, %s264
    %p271 = scmp.eq.s32.totalorder %s23, 1
    %p272 = por %p270, %p271
    %p273 = scmp.ne.s32.totalorder %s264, %s265
    %p274 = scmp.eq.s32.totalorder %s23, 0
    %p275 = por %p273, %p274
    %p276 = scmp.ne.s32.totalorder %s264, %s265
    %p277 = scmp.eq.s32.totalorder %s24, 1
    %p278 = por %p276, %p277
    %p280 = scmp.ne.s32.totalorder %s265, %s279
    %p281 = scmp.eq.s32.totalorder %s24, 0
    %p282 = por %p280, %p281
    %s283 = ssub.s32 %s18, %s25
    %p284 = scmp.eq.s32.totalorder %s283, 0
    %s286 = sadd.s32 %s285, 1
    %s287 = scalar_select %p284, %s285, %s286
    %p290 = pneg %p284
    %p291 = scmp.eq.s32.totalorder %s18, 1
    %p292 = por %p290, %p291
    %p293 = scmp.ne.s32.totalorder %s285, %s288
    %p294 = scmp.eq.s32.totalorder %s18, 0
    %p295 = por %p293, %p294
    %p296 = scmp.ne.s32.totalorder %s285, %s288
    %p297 = scmp.eq.s32.totalorder %s23, 1
    %p298 = por %p296, %p297
    %p299 = scmp.ne.s32.totalorder %s288, %s289
    %p300 = scmp.eq.s32.totalorder %s23, 0
    %p301 = por %p299, %p300
    %p302 = scmp.ne.s32.totalorder %s288, %s289
    %p303 = scmp.eq.s32.totalorder %s24, 1
    %p304 = por %p302, %p303
    %p306 = scmp.ne.s32.totalorder %s289, %s305
    %p307 = scmp.eq.s32.totalorder %s24, 0
    %p308 = por %p306, %p307
    %p309 = scmp.le.s32.totalorder 1, %s18
    %p310 = scmp.lt.s32.totalorder %s18, 3
    %p311 = pnand %p309, %p310
    %p312 = pneg %p311
    // Predicated region
    $region9: #{mlp_forward.1} parent=5 // pred_check
      _
    $region10: #{mlp_forward.1} parent=5 // pred_check_branch
      %314 = sbr.rel (%p311) target = $region12
    $region11: #{mlp_forward.1} parent=5 // pred_region
      %s315 = ssub.s32 %s18, 1
      // Predicated region
      $region13: #{mlp_forward.1} parent=11 // pred_check
        %p316 = pneg %p65
      $region14: #{mlp_forward.1} parent=11 // pred_check_branch
        %318 = sbr.rel (%p316) target = $region16
      $region15: #{mlp_forward.1} parent=11 // pred_region
        _
      $region16: #{mlp_forward.1} parent=11 // pred_fallthru
        _
      // Predicated region
      $region17: #{mlp_forward.1} parent=11 // pred_check
        %p319 = pneg %p86
      $region18: #{mlp_forward.1} parent=11 // pred_check_branch
        %321 = sbr.rel (%p319) target = $region20
      $region19: #{mlp_forward.1} parent=11 // pred_region
        _
      $region20: #{mlp_forward.1} parent=11 // pred_fallthru
        _
      // Predicated region
      $region21: #{mlp_forward.1} parent=11 // pred_check
        %p322 = pneg %p107
      $region22: #{mlp_forward.1} parent=11 // pred_check_branch
        %324 = sbr.rel (%p322) target = $region24
      $region23: #{mlp_forward.1} parent=11 // pred_region
        _
      $region24: #{mlp_forward.1} parent=11 // pred_fallthru
        _
      // Predicated region
      $region25: #{mlp_forward.1} parent=11 // pred_check
        %p325 = pneg %p128
      $region26: #{mlp_forward.1} parent=11 // pred_check_branch
        %327 = sbr.rel (%p325) target = $region28
      $region27: #{mlp_forward.1} parent=11 // pred_region
        _
      $region28: #{mlp_forward.1} parent=11 // pred_fallthru
        _
      // Predicated region
      $region29: #{mlp_forward.1} parent=11 // pred_check
        %p328 = pneg %p149
      $region30: #{mlp_forward.1} parent=11 // pred_check_branch
        %330 = sbr.rel (%p328) target = $region32
      $region31: #{mlp_forward.1} parent=11 // pred_region
        _
      $region32: #{mlp_forward.1} parent=11 // pred_fallthru
        _
      // Predicated region
      $region33: #{mlp_forward.1} parent=11 // pred_check
        %p331 = pneg %p170
      $region34: #{mlp_forward.1} parent=11 // pred_check_branch
        %333 = sbr.rel (%p331) target = $region36
      $region35: #{mlp_forward.1} parent=11 // pred_region
        _
      $region36: #{mlp_forward.1} parent=11 // pred_fallthru
        _
      // Predicated region
      $region37: #{mlp_forward.1} parent=11 // pred_check
        %p334 = pneg %p191
      $region38: #{mlp_forward.1} parent=11 // pred_check_branch
        %336 = sbr.rel (%p334) target = $region40
      $region39: #{mlp_forward.1} parent=11 // pred_region
        _
      $region40: #{mlp_forward.1} parent=11 // pred_fallthru
        _
      // Predicated region
      $region41: #{mlp_forward.1} parent=11 // pred_check
        %p337 = pneg %p212
      $region42: #{mlp_forward.1} parent=11 // pred_check_branch
        %339 = sbr.rel (%p337) target = $region44
      $region43: #{mlp_forward.1} parent=11 // pred_region
        _
      $region44: #{mlp_forward.1} parent=11 // pred_fallthru
        _
      // Predicated region
      $region45: #{mlp_forward.1} parent=11 // pred_check
        %p340 = pneg %p233
      $region46: #{mlp_forward.1} parent=11 // pred_check_branch
        %342 = sbr.rel (%p340) target = $region48
      $region47: #{mlp_forward.1} parent=11 // pred_region
        _
      $region48: #{mlp_forward.1} parent=11 // pred_fallthru
        _
      // Predicated region
      $region49: #{mlp_forward.1} parent=11 // pred_check
        %p343 = pneg %p254
      $region50: #{mlp_forward.1} parent=11 // pred_check_branch
        %345 = sbr.rel (%p343) target = $region52
      $region51: #{mlp_forward.1} parent=11 // pred_region
        _
      $region52: #{mlp_forward.1} parent=11 // pred_fallthru
        _
      // Predicated region
      $region53: #{mlp_forward.1} parent=11 // pred_check
        %p346 = pneg %p275
      $region54: #{mlp_forward.1} parent=11 // pred_check_branch
        %348 = sbr.rel (%p346) target = $region56
      $region55: #{mlp_forward.1} parent=11 // pred_region
        _
      $region56: #{mlp_forward.1} parent=11 // pred_fallthru
        _
    $region12: #{mlp_forward.1} parent=5 // pred_fallthru
      _
    %p349 = scmp.lt.s32.totalorder %s18, 2
    // Predicated region
    $region57: #{mlp_forward.1} parent=5 // pred_check
      %p350 = pneg %p349
    $region58: #{mlp_forward.1} parent=5 // pred_check_branch
      %352 = sbr.rel (%p350) target = $region60
    $region59: #{mlp_forward.1} parent=5 // pred_region
      // Predicated region
      $region61: #{mlp_forward.1} parent=59 // pred_check
        %p353 = pneg %p38
      $region62: #{mlp_forward.1} parent=59 // pred_check_branch
        %355 = sbr.rel (%p353) target = $region64
      $region63: #{mlp_forward.1} parent=59 // pred_region
        %s356 = smul.u32 2, %s18
        %p357 = scmp.lt.s32.totalorder %s356, 3
        %s358 = scalar_select %p357, %s356, 3
        %s359 = smul.addr %s358, 2
        %s360 = smul.addr %s359, 4
        %s361 = scalar_lea.vmem %s0, %s360
        %s362 = smul.u32 2, %s18
      $region64: #{mlp_forward.1} parent=59 // pred_fallthru
        _
    $region60: #{mlp_forward.1} parent=5 // pred_fallthru
      _
    %p363 = scmp.le.s32.totalorder 1, %s18
    %p364 = scmp.lt.s32.totalorder %s18, 3
    %p365 = pnand %p363, %p364
    %p366 = pneg %p365
    // Predicated region
    $region65: #{mlp_forward.1} parent=5 // pred_check
      _
    $region66: #{mlp_forward.1} parent=5 // pred_check_branch
      %368 = sbr.rel (%p365) target = $region68
    $region67: #{mlp_forward.1} parent=5 // pred_region
      %s369 = ssub.s32 %s18, 1
      %s370 = smul.u32 2, %s23
      %p371 = scmp.lt.s32.totalorder %s370, 3
      %s372 = scalar_select %p371, %s370, 3
      %s373 = smul.addr %s372, 2
      %s374 = smul.addr %s373, 4
      %s375 = scalar_lea.vmem %s0, %s374
      %p376 = pneg %p44
      %p377 = pneg %p41
      %p378 = pneg %p65
      %p379 = pneg %p62
      %p380 = pneg %p86
      %p381 = pneg %p83
      %p382 = pneg %p107
      %p383 = pneg %p104
      %p384 = pneg %p128
      %p385 = pneg %p125
      %p386 = pneg %p149
      %p387 = pneg %p146
      %p388 = pneg %p170
      %p389 = pneg %p167
      %p390 = pneg %p191
      %p391 = pneg %p188
      %p392 = pneg %p212
      %p393 = pneg %p209
      %p394 = pneg %p233
      %p395 = pneg %p230
      %p396 = pneg %p254
      %p397 = pneg %p251
      %p398 = pneg %p275
      %p399 = pneg %p272
      %p400 = pneg %p301
      %p401 = pneg %p298
      %s402 = smul.u32 2, %s23
      %p403 = scmp.lt.s32.totalorder %s402, 3
      %s404 = scalar_select %p403, %s402, 3
      %s405 = smul.addr %s404, 8
      %s406 = scalar_lea.vmem %s12, %s405
      %s407 = smul.u32 2, %s23
      %p408 = scmp.lt.s32.totalorder %s407, 3
      %s409 = scalar_select %p408, %s407, 3
      %s410 = smul.addr %s409, 2
      %s411 = smul.addr %s410, 4
      %s412 = scalar_lea.vmem %s0, %s411
      %s413 = smul.u32 2, %s23
      %s414 = smul.u32 2, %s23
      %p415 = scmp.lt.s32.totalorder %s414, 3
      %s416 = scalar_select %p415, %s414, 3
      %s417 = smul.addr %s416, 8
      %s418 = scalar_lea.vmem %s12, %s417
      %s419 = smul.u32 2, %s23
      %v420 = vld [vmem:[%s412] sm:$0xff]
      %v421 = vld [vmem:[%s412 + $0x8] sm:$0xff]
      %v422 = vld [vmem:[%s1] sm:$0xff]
      %v423 = vld [vmem:[%s1 + $0x8] sm:$0xff]
      %v424 = vld [vmem:[%s1 + $0x10] sm:$0xf]
      %v425 = vld [vmem:[%s1 + $0x14] sm:$0xff]
      %v426 = vld [vmem:[%s1 + $0x1c] sm:$0xff]
      %v427 = vld [vmem:[%s1 + $0x24] sm:$0xf]
      %v428 = vld [vmem:[%s1 + $0x28] sm:$0xff]
      %v429 = vld [vmem:[%s1 + $0x30] sm:$0xff]
      %v430 = vld [vmem:[%s1 + $0x38] sm:$0xf]
      %v431 = vld [vmem:[%s1 + $0x3c] sm:$0xff]
      %v432 = vld [vmem:[%s1 + $0x44] sm:$0xff]
      %v433 = vld [vmem:[%s1 + $0x4c] sm:$0xf]
      %v434 = vld [vmem:[%s1 + $0x50] sm:$0xff]
      %v435 = vld [vmem:[%s1 + $0x58] sm:$0xff]
      %v436 = vld [vmem:[%s1 + $0x60] sm:$0xf]
      %v437 = vld [vmem:[%s1 + $0x64] sm:$0xff]
      %v438 = vld [vmem:[%s1 + $0x6c] sm:$0xff]
      %v439 = vld [vmem:[%s1 + $0x74] sm:$0xf]
      %v440 = vld [vmem:[%s1 + $0x78] sm:$0xff]
      %v441 = vld [vmem:[%s1 + $0x80] sm:$0xff]
      %v442 = vld [vmem:[%s1 + $0x88] sm:$0xf]
      %v443 = vld [vmem:[%s1 + $0x8c] sm:$0xff]
      %v444 = vld [vmem:[%s1 + $0x94] sm:$0xff]
      %v445 = vld [vmem:[%s1 + $0x9c] sm:$0xf]
      %v446 = vld [vmem:[%s1 + $0xa0] sm:$0xff]
      %v447 = vld [vmem:[%s1 + $0xa8] sm:$0xff]
      %v448 = vld [vmem:[%s1 + $0xb0] sm:$0xf]
      %v449 = vld [vmem:[%s1 + $0xb4] sm:$0xff]
      %v450 = vld [vmem:[%s1 + $0xbc] sm:$0xff]
      %v451 = vld [vmem:[%s1 + $0xc4] sm:$0xf]
      %v452 = vld [vmem:[%s1 + $0xc8] sm:$0xff]
      %v453 = vld [vmem:[%s1 + $0xd0] sm:$0xff]
      %v454 = vld [vmem:[%s1 + $0xd8] sm:$0xf]
      %v455 = vld [vmem:[%s1 + $0xdc] sm:$0xff]
      %v456 = vld [vmem:[%s1 + $0xe4] sm:$0xff]
      %v457 = vld [vmem:[%s1 + $0xec] sm:$0xf]
      %v458 = vld [vmem:[%s1 + $0xf0] sm:$0xff]
      %v459 = vld [vmem:[%s1 + $0xf8] sm:$0xff]
      %v460 = vld [vmem:[%s1 + $0x100] sm:$0xf]
      %v461 = vld [vmem:[%s1 + $0x104] sm:$0xff]
      %v462 = vld [vmem:[%s1 + $0x10c] sm:$0xff]
      %v463 = vld [vmem:[%s1 + $0x114] sm:$0xf]
      %v464 = vld [vmem:[%s1 + $0x118] sm:$0xff]
      %v465 = vld [vmem:[%s1 + $0x120] sm:$0xff]
      %v466 = vld [vmem:[%s1 + $0x128] sm:$0xf]
      %v467 = vld [vmem:[%s1 + $0x12c] sm:$0xff]
      %v468 = vld [vmem:[%s1 + $0x134] sm:$0xff]
      %v469 = vld [vmem:[%s1 + $0x13c] sm:$0xf]
      %v470 = vld [vmem:[%s1 + $0x140] sm:$0xff]
      %v471 = vld [vmem:[%s1 + $0x148] sm:$0xff]
      %v472 = vld [vmem:[%s1 + $0x150] sm:$0xf]
      %v473 = vld [vmem:[%s1 + $0x154] sm:$0xff]
      %v474 = vld [vmem:[%s1 + $0x15c] sm:$0xff]
      %v475 = vld [vmem:[%s1 + $0x164] sm:$0xf]
      %v476 = vld [vmem:[%s1 + $0x168] sm:$0xff]
      %v477 = vld [vmem:[%s1 + $0x170] sm:$0xff]
      %v478 = vld [vmem:[%s1 + $0x178] sm:$0xf]
      %v479 = vld [vmem:[%s1 + $0x17c] sm:$0xff]
      %v480 = vld [vmem:[%s1 + $0x184] sm:$0xff]
      %v481 = vld [vmem:[%s1 + $0x18c] sm:$0xf]
      %v482 = vld [vmem:[%s1 + $0x190] sm:$0xff]
      %v483 = vld [vmem:[%s1 + $0x198] sm:$0xff]
      %v484 = vld [vmem:[%s1 + $0x1a0] sm:$0xf]
      %v485 = vld [vmem:[%s1 + $0x1a4] sm:$0xff]
      %v486 = vld [vmem:[%s1 + $0x1ac] sm:$0xff]
      %v487 = vld [vmem:[%s1 + $0x1b4] sm:$0xf]
      %v488 = vld [vmem:[%s1 + $0x1b8] sm:$0xff]
      %v489 = vld [vmem:[%s1 + $0x1c0] sm:$0xff]
      %v490 = vld [vmem:[%s1 + $0x1c8] sm:$0xf]
      %v491 = vld [vmem:[%s1 + $0x1cc] sm:$0xff]
      %v492 = vld [vmem:[%s1 + $0x1d4] sm:$0xff]
      %v493 = vld [vmem:[%s1 + $0x1dc] sm:$0xf]
      %v494 = vld [vmem:[%s1 + $0x1e0] sm:$0xff]
      %v495 = vld [vmem:[%s1 + $0x1e8] sm:$0xff]
      %v496 = vld [vmem:[%s1 + $0x1f0] sm:$0xf]
      %v497 = vld [vmem:[%s1 + $0x1f4] sm:$0xff]
      %v498 = vld [vmem:[%s1 + $0x1fc] sm:$0xff]
      %v499 = vld [vmem:[%s1 + $0x204] sm:$0xf]
      %v500 = vld [vmem:[%s1 + $0x208] sm:$0xff]
      %v501 = vld [vmem:[%s1 + $0x210] sm:$0xff]
      %v502 = vld [vmem:[%s1 + $0x218] sm:$0xf]
      %v503 = vld [vmem:[%s1 + $0x21c] sm:$0xff]
      %v504 = vld [vmem:[%s1 + $0x224] sm:$0xff]
      %v505 = vld [vmem:[%s1 + $0x22c] sm:$0xf]
      %v506 = vld [vmem:[%s1 + $0x230] sm:$0xff]
      %v507 = vld [vmem:[%s1 + $0x238] sm:$0xff]
      %v508 = vld [vmem:[%s1 + $0x240] sm:$0xf]
      %v509 = vld [vmem:[%s1 + $0x244] sm:$0xff]
      %v510 = vld [vmem:[%s1 + $0x24c] sm:$0xff]
      %v511 = vld [vmem:[%s1 + $0x254] sm:$0xf]
      %v512 = vld [vmem:[%s1 + $0x258] sm:$0xff]
      %v513 = vld [vmem:[%s1 + $0x260] sm:$0xff]
      %v514 = vld [vmem:[%s1 + $0x268] sm:$0xf]
      %v515 = vld [vmem:[%s1 + $0x26c] sm:$0xff]
      %v516 = vld [vmem:[%s1 + $0x274] sm:$0xff]
      %v517 = vld [vmem:[%s1 + $0x27c] sm:$0xf]
      %v518 = vld [vmem:[%s2] sm:$0x1f]
      %v520 = vperm.slane %v518, 0
      %v521 = vperm.slane %v518, 1
      %v522 = vperm.slane %v518, 2
      %v523 = vperm.slane %v518, 3
      %v524 = vperm.slane %v518, 4
      %v532 = vunpack.c.l.b16 %v420
      %v533 = vunpack.c.h.b16 %v420
      %v534 = vunpack.c.l.b16 %v421
      %v535 = vunpack.c.h.b16 %v421
      %v536 = vpack.c.b16 %v534, %v532
      %v537 = vpack.c.b16 %v535, %v533
      %v636 = vunpack.c.l.b16 %v422
      %v637 = vunpack.c.h.b16 %v422
      %v638 = vunpack.c.l.b16 %v423
      %v639 = vunpack.c.h.b16 %v423
      %v640 = vunpack.c.l.b16 %v424
      %v641 = vunpack.c.l.b16 %v425
      %v642 = vunpack.c.h.b16 %v425
      %v643 = vunpack.c.l.b16 %v426
      %v644 = vunpack.c.h.b16 %v426
      %v645 = vunpack.c.l.b16 %v427
      %v646 = vunpack.c.l.b16 %v428
      %v647 = vunpack.c.h.b16 %v428
      %v648 = vunpack.c.l.b16 %v429
      %v649 = vunpack.c.h.b16 %v429
      %v650 = vunpack.c.l.b16 %v430
      %v651 = vunpack.c.l.b16 %v431
      %v652 = vunpack.c.h.b16 %v431
      %v653 = vunpack.c.l.b16 %v432
      %v654 = vunpack.c.h.b16 %v432
      %v655 = vunpack.c.l.b16 %v433
      %v656 = vunpack.c.l.b16 %v434
      %v657 = vunpack.c.h.b16 %v434
      %v658 = vunpack.c.l.b16 %v435
      %v659 = vunpack.c.h.b16 %v435
      %v660 = vunpack.c.l.b16 %v436
      %v661 = vunpack.c.l.b16 %v437
      %v662 = vunpack.c.h.b16 %v437
      %v663 = vunpack.c.l.b16 %v438
      %v664 = vunpack.c.h.b16 %v438
      %v665 = vunpack.c.l.b16 %v439
      %v666 = vunpack.c.l.b16 %v440
      %v667 = vunpack.c.h.b16 %v440
      %v668 = vunpack.c.l.b16 %v441
      %v669 = vunpack.c.h.b16 %v441
      %v670 = vunpack.c.l.b16 %v442
      %v671 = vunpack.c.l.b16 %v443
      %v672 = vunpack.c.h.b16 %v443
      %v673 = vunpack.c.l.b16 %v444
      %v674 = vunpack.c.h.b16 %v444
      %v675 = vunpack.c.l.b16 %v445
      %v676 = vunpack.c.l.b16 %v446
      %v677 = vunpack.c.h.b16 %v446
      %v678 = vunpack.c.l.b16 %v447
      %v679 = vunpack.c.h.b16 %v447
      %v680 = vunpack.c.l.b16 %v448
      %v681 = vunpack.c.l.b16 %v449
      %v682 = vunpack.c.h.b16 %v449
      %v683 = vunpack.c.l.b16 %v450
      %v684 = vunpack.c.h.b16 %v450
      %v685 = vunpack.c.l.b16 %v451
      %v686 = vunpack.c.l.b16 %v452
      %v687 = vunpack.c.h.b16 %v452
      %v688 = vunpack.c.l.b16 %v453
      %v689 = vunpack.c.h.b16 %v453
      %v690 = vunpack.c.l.b16 %v454
      %v691 = vunpack.c.l.b16 %v455
      %v692 = vunpack.c.h.b16 %v455
      %v693 = vunpack.c.l.b16 %v456
      %v694 = vunpack.c.h.b16 %v456
      %v695 = vunpack.c.l.b16 %v457
      %v696 = vunpack.c.l.b16 %v458
      %v697 = vunpack.c.h.b16 %v458
      %v698 = vunpack.c.l.b16 %v459
      %v699 = vunpack.c.h.b16 %v459
      %v700 = vunpack.c.l.b16 %v460
      %v701 = vunpack.c.l.b16 %v461
      %v702 = vunpack.c.h.b16 %v461
      %v703 = vunpack.c.l.b16 %v462
      %v704 = vunpack.c.h.b16 %v462
      %v705 = vunpack.c.l.b16 %v463
      %v706 = vunpack.c.l.b16 %v464
      %v707 = vunpack.c.h.b16 %v464
      %v708 = vunpack.c.l.b16 %v465
      %v709 = vunpack.c.h.b16 %v465
      %v710 = vunpack.c.l.b16 %v466
      %v711 = vunpack.c.l.b16 %v467
      %v712 = vunpack.c.h.b16 %v467
      %v713 = vunpack.c.l.b16 %v468
      %v714 = vunpack.c.h.b16 %v468
      %v715 = vunpack.c.l.b16 %v469
      %v716 = vunpack.c.l.b16 %v470
      %v717 = vunpack.c.h.b16 %v470
      %v718 = vunpack.c.l.b16 %v471
      %v719 = vunpack.c.h.b16 %v471
      %v720 = vunpack.c.l.b16 %v472
      %v721 = vunpack.c.l.b16 %v473
      %v722 = vunpack.c.h.b16 %v473
      %v723 = vunpack.c.l.b16 %v474
      %v724 = vunpack.c.h.b16 %v474
      %v725 = vunpack.c.l.b16 %v475
      %v726 = vunpack.c.l.b16 %v476
      %v727 = vunpack.c.h.b16 %v476
      %v728 = vunpack.c.l.b16 %v477
      %v729 = vunpack.c.h.b16 %v477
      %v730 = vunpack.c.l.b16 %v478
      %v731 = vunpack.c.l.b16 %v479
      %v732 = vunpack.c.h.b16 %v479
      %v733 = vunpack.c.l.b16 %v480
      %v734 = vunpack.c.h.b16 %v480
      %v735 = vunpack.c.l.b16 %v481
      %v736 = vunpack.c.l.b16 %v482
      %v737 = vunpack.c.h.b16 %v482
      %v738 = vunpack.c.l.b16 %v483
      %v739 = vunpack.c.h.b16 %v483
      %v740 = vunpack.c.l.b16 %v484
      %v741 = vunpack.c.l.b16 %v485
      %v742 = vunpack.c.h.b16 %v485
      %v743 = vunpack.c.l.b16 %v486
      %v744 = vunpack.c.h.b16 %v486
      %v745 = vunpack.c.l.b16 %v487
      %v746 = vunpack.c.l.b16 %v488
      %v747 = vunpack.c.h.b16 %v488
      %v748 = vunpack.c.l.b16 %v489
      %v749 = vunpack.c.h.b16 %v489
      %v750 = vunpack.c.l.b16 %v490
      %v751 = vunpack.c.l.b16 %v491
      %v752 = vunpack.c.h.b16 %v491
      %v753 = vunpack.c.l.b16 %v492
      %v754 = vunpack.c.h.b16 %v492
      %v755 = vunpack.c.l.b16 %v493
      %v756 = vunpack.c.l.b16 %v494
      %v757 = vunpack.c.h.b16 %v494
      %v758 = vunpack.c.l.b16 %v495
      %v759 = vunpack.c.h.b16 %v495
      %v760 = vunpack.c.l.b16 %v496
      %v761 = vunpack.c.l.b16 %v497
      %v762 = vunpack.c.h.b16 %v497
      %v763 = vunpack.c.l.b16 %v498
      %v764 = vunpack.c.h.b16 %v498
      %v765 = vunpack.c.l.b16 %v499
      %v766 = vunpack.c.l.b16 %v500
      %v767 = vunpack.c.h.b16 %v500
      %v768 = vunpack.c.l.b16 %v501
      %v769 = vunpack.c.h.b16 %v501
      %v770 = vunpack.c.l.b16 %v502
      %v771 = vunpack.c.l.b16 %v503
      %v772 = vunpack.c.h.b16 %v503
      %v773 = vunpack.c.l.b16 %v504
      %v774 = vunpack.c.h.b16 %v504
      %v775 = vunpack.c.l.b16 %v505
      %v776 = vunpack.c.l.b16 %v506
      %v777 = vunpack.c.h.b16 %v506
      %v778 = vunpack.c.l.b16 %v507
      %v779 = vunpack.c.h.b16 %v507
      %v780 = vunpack.c.l.b16 %v508
      %v781 = vunpack.c.l.b16 %v509
      %v782 = vunpack.c.h.b16 %v509
      %v783 = vunpack.c.l.b16 %v510
      %v784 = vunpack.c.h.b16 %v510
      %v785 = vunpack.c.l.b16 %v511
      %v786 = vunpack.c.l.b16 %v512
      %v787 = vunpack.c.h.b16 %v512
      %v788 = vunpack.c.l.b16 %v513
      %v789 = vunpack.c.h.b16 %v513
      %v790 = vunpack.c.l.b16 %v514
      %v791 = vunpack.c.l.b16 %v515
      %v792 = vunpack.c.h.b16 %v515
      %v793 = vunpack.c.l.b16 %v516
      %v794 = vunpack.c.h.b16 %v516
      %v795 = vunpack.c.l.b16 %v517
      %v796 = vpack.c.b16 %v641, %v636
      %v797 = vpack.c.b16 %v642, %v637
      %v798 = vpack.c.b16 %v643, %v638
      %v799 = vpack.c.b16 %v644, %v639
      %v800 = vpack.c.b16 %v645, %v640
      %v801 = vpack.c.b16 %v651, %v646
      %v802 = vpack.c.b16 %v652, %v647
      %v803 = vpack.c.b16 %v653, %v648
      %v804 = vpack.c.b16 %v654, %v649
      %v805 = vpack.c.b16 %v655, %v650
      %v806 = vpack.c.b16 %v661, %v656
      %v807 = vpack.c.b16 %v662, %v657
      %v808 = vpack.c.b16 %v663, %v658
      %v809 = vpack.c.b16 %v664, %v659
      %v810 = vpack.c.b16 %v665, %v660
      %v811 = vpack.c.b16 %v671, %v666
      %v812 = vpack.c.b16 %v672, %v667
      %v813 = vpack.c.b16 %v673, %v668
      %v814 = vpack.c.b16 %v674, %v669
      %v815 = vpack.c.b16 %v675, %v670
      %v816 = vpack.c.b16 %v681, %v676
      %v817 = vpack.c.b16 %v682, %v677
      %v818 = vpack.c.b16 %v683, %v678
      %v819 = vpack.c.b16 %v684, %v679
      %v820 = vpack.c.b16 %v685, %v680
      %v821 = vpack.c.b16 %v691, %v686
      %v822 = vpack.c.b16 %v692, %v687
      %v823 = vpack.c.b16 %v693, %v688
      %v824 = vpack.c.b16 %v694, %v689
      %v825 = vpack.c.b16 %v695, %v690
      %v826 = vpack.c.b16 %v701, %v696
      %v827 = vpack.c.b16 %v702, %v697
      %v828 = vpack.c.b16 %v703, %v698
      %v829 = vpack.c.b16 %v704, %v699
      %v830 = vpack.c.b16 %v705, %v700
      %v831 = vpack.c.b16 %v711, %v706
      %v832 = vpack.c.b16 %v712, %v707
      %v833 = vpack.c.b16 %v713, %v708
      %v834 = vpack.c.b16 %v714, %v709
      %v835 = vpack.c.b16 %v715, %v710
      %v836 = vpack.c.b16 %v721, %v716
      %v837 = vpack.c.b16 %v722, %v717
      %v838 = vpack.c.b16 %v723, %v718
      %v839 = vpack.c.b16 %v724, %v719
      %v840 = vpack.c.b16 %v725, %v720
      %v841 = vpack.c.b16 %v731, %v726
      %v842 = vpack.c.b16 %v732, %v727
      %v843 = vpack.c.b16 %v733, %v728
      %v844 = vpack.c.b16 %v734, %v729
      %v845 = vpack.c.b16 %v735, %v730
      %v846 = vpack.c.b16 %v741, %v736
      %v847 = vpack.c.b16 %v742, %v737
      %v848 = vpack.c.b16 %v743, %v738
      %v849 = vpack.c.b16 %v744, %v739
      %v850 = vpack.c.b16 %v745, %v740
      %v851 = vpack.c.b16 %v751, %v746
      %v852 = vpack.c.b16 %v752, %v747
      %v853 = vpack.c.b16 %v753, %v748
      %v854 = vpack.c.b16 %v754, %v749
      %v855 = vpack.c.b16 %v755, %v750
      %v856 = vpack.c.b16 %v761, %v756
      %v857 = vpack.c.b16 %v762, %v757
      %v858 = vpack.c.b16 %v763, %v758
      %v859 = vpack.c.b16 %v764, %v759
      %v860 = vpack.c.b16 %v765, %v760
      %v861 = vpack.c.b16 %v771, %v766
      %v862 = vpack.c.b16 %v772, %v767
      %v863 = vpack.c.b16 %v773, %v768
      %v864 = vpack.c.b16 %v774, %v769
      %v865 = vpack.c.b16 %v775, %v770
      %v866 = vpack.c.b16 %v781, %v776
      %v867 = vpack.c.b16 %v782, %v777
      %v868 = vpack.c.b16 %v783, %v778
      %v869 = vpack.c.b16 %v784, %v779
      %v870 = vpack.c.b16 %v785, %v780
      %v871 = vpack.c.b16 %v791, %v786
      %v872 = vpack.c.b16 %v792, %v787
      %v873 = vpack.c.b16 %v793, %v788
      %v874 = vpack.c.b16 %v794, %v789
      %v875 = vpack.c.b16 %v795, %v790
      %956 = vmatpush.bf16.msra.mxu0 %v831
      %957 = vmatpush.bf16.msra.mxu0 %v826
      %958 = vmatpush.bf16.msra.mxu0 %v821
      %959 = vmatpush.bf16.msra.mxu0 %v816
      %960 = vmatpush.bf16.msra.mxu0 %v811
      %961 = vmatpush.bf16.msra.mxu0 %v806
      %962 = vmatpush.bf16.msra.mxu0 %v801
      %963 = vmatpush.bf16.msra.mxu0 %v796
      %964 = vmatmul.bf16.gmra.mxu0 %v536
      %v965 = vpop.f32.mrf.mxu0
      %v966 = vadd.f32 %v520, %v965
      %v967 = vpop.f32.mrf.mxu0
      %v968 = vadd.f32 %v520, %v967
      %969 = vdwg.mxu0
      %970 = vmatpush.bf16.msra.mxu0 %v871
      %971 = vmatpush.bf16.msra.mxu0 %v866
      %972 = vmatpush.bf16.msra.mxu0 %v861
      %973 = vmatpush.bf16.msra.mxu0 %v856
      %974 = vmatpush.bf16.msra.mxu0 %v851
      %975 = vmatpush.bf16.msra.mxu0 %v846
      %976 = vmatpush.bf16.msra.mxu0 %v841
      %977 = vmatpush.bf16.msra.mxu0 %v836
      %978 = vmatmul.bf16.gmra.mxu0 %v537
      %v979 = vpop.f32.mrf.mxu0
      %v980 = vadd.f32 %v966, %v979
      %v981 = vpop.f32.mrf.mxu0
      %v982 = vadd.f32 %v968, %v981
      %983 = vdwg.mxu0
      %984 = vmatpush.bf16.msra.mxu0 %v832
      %985 = vmatpush.bf16.msra.mxu0 %v827
      %986 = vmatpush.bf16.msra.mxu0 %v822
      %987 = vmatpush.bf16.msra.mxu0 %v817
      %988 = vmatpush.bf16.msra.mxu0 %v812
      %989 = vmatpush.bf16.msra.mxu0 %v807
      %990 = vmatpush.bf16.msra.mxu0 %v802
      %991 = vmatpush.bf16.msra.mxu0 %v797
      %992 = vmatmul.bf16.gmra.mxu0 %v536
      %v993 = vpop.f32.mrf.mxu0
      %v994 = vadd.f32 %v521, %v993
      %v995 = vpop.f32.mrf.mxu0
      %v996 = vadd.f32 %v521, %v995
      %997 = vdwg.mxu0
      %998 = vmatpush.bf16.msra.mxu0 %v872
      %999 = vmatpush.bf16.msra.mxu0 %v867
      %1000 = vmatpush.bf16.msra.mxu0 %v862
      %1001 = vmatpush.bf16.msra.mxu0 %v857
      %1002 = vmatpush.bf16.msra.mxu0 %v852
      %1003 = vmatpush.bf16.msra.mxu0 %v847
      %1004 = vmatpush.bf16.msra.mxu0 %v842
      %1005 = vmatpush.bf16.msra.mxu0 %v837
      %1006 = vmatmul.bf16.gmra.mxu0 %v537
      %v1007 = vpop.f32.mrf.mxu0
      %v1008 = vadd.f32 %v994, %v1007
      %v1009 = vpop.f32.mrf.mxu0
      %v1010 = vadd.f32 %v996, %v1009
      %1011 = vdwg.mxu0
      %1012 = vmatpush.bf16.msra.mxu0 %v833
      %1013 = vmatpush.bf16.msra.mxu0 %v828
      %1014 = vmatpush.bf16.msra.mxu0 %v823
      %1015 = vmatpush.bf16.msra.mxu0 %v818
      %1016 = vmatpush.bf16.msra.mxu0 %v813
      %1017 = vmatpush.bf16.msra.mxu0 %v808
      %1018 = vmatpush.bf16.msra.mxu0 %v803
      %1019 = vmatpush.bf16.msra.mxu0 %v798
      %1020 = vmatmul.bf16.gmra.mxu0 %v536
      %v1021 = vpop.f32.mrf.mxu0
      %v1022 = vadd.f32 %v522, %v1021
      %v1023 = vpop.f32.mrf.mxu0
      %v1024 = vadd.f32 %v522, %v1023
      %1025 = vdwg.mxu0
      %1026 = vmatpush.bf16.msra.mxu0 %v873
      %1027 = vmatpush.bf16.msra.mxu0 %v868
      %1028 = vmatpush.bf16.msra.mxu0 %v863
      %1029 = vmatpush.bf16.msra.mxu0 %v858
      %1030 = vmatpush.bf16.msra.mxu0 %v853
      %1031 = vmatpush.bf16.msra.mxu0 %v848
      %1032 = vmatpush.bf16.msra.mxu0 %v843
      %1033 = vmatpush.bf16.msra.mxu0 %v838
      %1034 = vmatmul.bf16.gmra.mxu0 %v537
      %v1035 = vpop.f32.mrf.mxu0
      %v1036 = vadd.f32 %v1022, %v1035
      %v1037 = vpop.f32.mrf.mxu0
      %v1038 = vadd.f32 %v1024, %v1037
      %1039 = vdwg.mxu0
      %1040 = vmatpush.bf16.msra.mxu0 %v834
      %1041 = vmatpush.bf16.msra.mxu0 %v829
      %1042 = vmatpush.bf16.msra.mxu0 %v824
      %1043 = vmatpush.bf16.msra.mxu0 %v819
      %1044 = vmatpush.bf16.msra.mxu0 %v814
      %1045 = vmatpush.bf16.msra.mxu0 %v809
      %1046 = vmatpush.bf16.msra.mxu0 %v804
      %1047 = vmatpush.bf16.msra.mxu0 %v799
      %1048 = vmatmul.bf16.gmra.mxu0 %v536
      %v1049 = vpop.f32.mrf.mxu0
      %v1050 = vadd.f32 %v523, %v1049
      %v1051 = vpop.f32.mrf.mxu0
      %v1052 = vadd.f32 %v523, %v1051
      %1053 = vdwg.mxu0
      %1054 = vmatpush.bf16.msra.mxu0 %v874
      %1055 = vmatpush.bf16.msra.mxu0 %v869
      %1056 = vmatpush.bf16.msra.mxu0 %v864
      %1057 = vmatpush.bf16.msra.mxu0 %v859
      %1058 = vmatpush.bf16.msra.mxu0 %v854
      %1059 = vmatpush.bf16.msra.mxu0 %v849
      %1060 = vmatpush.bf16.msra.mxu0 %v844
      %1061 = vmatpush.bf16.msra.mxu0 %v839
      %1062 = vmatmul.bf16.gmra.mxu0 %v537
      %v1063 = vpop.f32.mrf.mxu0
      %v1064 = vadd.f32 %v1050, %v1063
      %v1065 = vpop.f32.mrf.mxu0
      %v1066 = vadd.f32 %v1052, %v1065
      %1067 = vdwg.mxu0
      %1068 = vmatpush.bf16.msra.mxu0 %v835
      %1069 = vmatpush.bf16.msra.mxu0 %v830
      %1070 = vmatpush.bf16.msra.mxu0 %v825
      %1071 = vmatpush.bf16.msra.mxu0 %v820
      %1072 = vmatpush.bf16.msra.mxu0 %v815
      %1073 = vmatpush.bf16.msra.mxu0 %v810
      %1074 = vmatpush.bf16.msra.mxu0 %v805
      %1075 = vmatpush.bf16.msra.mxu0 %v800
      %1076 = vmatmul.bf16.gmra.mxu0 %v536
      %v1077 = vpop.f32.mrf.mxu0
      %v1078 = vadd.f32 %v524, %v1077
      %v1079 = vpop.f32.mrf.mxu0
      %v1080 = vadd.f32 %v524, %v1079
      %1081 = vdwg.mxu0
      %1082 = vmatpush.bf16.msra.mxu0 %v875
      %1083 = vmatpush.bf16.msra.mxu0 %v870
      %1084 = vmatpush.bf16.msra.mxu0 %v865
      %1085 = vmatpush.bf16.msra.mxu0 %v860
      %1086 = vmatpush.bf16.msra.mxu0 %v855
      %1087 = vmatpush.bf16.msra.mxu0 %v850
      %1088 = vmatpush.bf16.msra.mxu0 %v845
      %1089 = vmatpush.bf16.msra.mxu0 %v840
      %1090 = vmatmul.bf16.gmra.mxu0 %v537
      %v1091 = vpop.f32.mrf.mxu0
      %v1092 = vadd.f32 %v1078, %v1091
      %v1093 = vpop.f32.mrf.mxu0
      %v1094 = vadd.f32 %v1080, %v1093
      %1095 = vdwg.mxu0
      %vm1096 = vcmp.ge.f32.partialorder %v980, 0.0
      %vm1097 = vcmp.ge.f32.partialorder %v1008, 0.0
      %vm1098 = vcmp.ge.f32.partialorder %v1036, 0.0
      %vm1099 = vcmp.ge.f32.partialorder %v1064, 0.0
      %vm1100 = vcmp.ge.f32.partialorder %v1092, 0.0
      %vm1101 = vcmp.ge.f32.partialorder %v982, 0.0
      %vm1102 = vcmp.ge.f32.partialorder %v1010, 0.0
      %vm1103 = vcmp.ge.f32.partialorder %v1038, 0.0
      %vm1104 = vcmp.ge.f32.partialorder %v1066, 0.0
      %vm1105 = vcmp.ge.f32.partialorder %v1094, 0.0
      %v1106 = vmul.f32 %v980, 0.01
      %v1107 = vmul.f32 %v1008, 0.01
      %v1108 = vmul.f32 %v1036, 0.01
      %v1109 = vmul.f32 %v1064, 0.01
      %v1110 = vmul.f32 %v1092, 0.01
      %v1111 = vmul.f32 %v982, 0.01
      %v1112 = vmul.f32 %v1010, 0.01
      %v1113 = vmul.f32 %v1038, 0.01
      %v1114 = vmul.f32 %v1066, 0.01
      %v1115 = vmul.f32 %v1094, 0.01
      %v1116 = vsel %vm1096, %v980, %v1106
      %v1117 = vsel %vm1097, %v1008, %v1107
      %v1118 = vsel %vm1098, %v1036, %v1108
      %v1119 = vsel %vm1099, %v1064, %v1109
      %v1120 = vsel %vm1100, %v1092, %v1110
      %v1121 = vsel %vm1101, %v982, %v1111
      %v1122 = vsel %vm1102, %v1010, %v1112
      %v1123 = vsel %vm1103, %v1038, %v1113
      %v1124 = vsel %vm1104, %v1066, %v1114
      %v1125 = vsel %vm1105, %v1094, %v1115
      %v1126 = vpack.c.bf16 %v1121, %v1116
      %v1127 = vpack.c.bf16 %v1122, %v1117
      %v1128 = vpack.c.bf16 %v1123, %v1118
      %v1129 = vpack.c.bf16 %v1124, %v1119
      %v1130 = vpack.c.bf16 %v1125, %v1120
      %v1131 = vld [vmem:[%s3] sm:$0xff]
      %v1132 = vld [vmem:[%s3 + $0x8] sm:$0xff]
      %v1133 = vld [vmem:[%s3 + $0x10] sm:$0xff]
      %v1134 = vld [vmem:[%s3 + $0x18] sm:$0xff]
      %v1135 = vld [vmem:[%s3 + $0x20] sm:$0xff]
      %v1136 = vld [vmem:[%s3 + $0x28] sm:$0xff]
      %v1137 = vld [vmem:[%s3 + $0x30] sm:$0xff]
      %v1138 = vld [vmem:[%s3 + $0x38] sm:$0xff]
      %v1139 = vld [vmem:[%s3 + $0x40] sm:$0xff]
      %v1140 = vld [vmem:[%s3 + $0x48] sm:$0xff]
      %v1141 = vld [vmem:[%s3 + $0x50] sm:$0xff]
      %v1142 = vld [vmem:[%s3 + $0x58] sm:$0xff]
      %v1143 = vld [vmem:[%s3 + $0x60] sm:$0xff]
      %v1144 = vld [vmem:[%s3 + $0x68] sm:$0xff]
      %v1145 = vld [vmem:[%s3 + $0x70] sm:$0xff]
      %v1146 = vld [vmem:[%s3 + $0x78] sm:$0xff]
      %v1147 = vld [vmem:[%s3 + $0x80] sm:$0xff]
      %v1148 = vld [vmem:[%s3 + $0x88] sm:$0xff]
      %v1149 = vld [vmem:[%s3 + $0x90] sm:$0xff]
      %v1150 = vld [vmem:[%s3 + $0x98] sm:$0xff]
      %v1151 = vld [vmem:[%s3 + $0xa0] sm:$0xff]
      %v1152 = vld [vmem:[%s3 + $0xa8] sm:$0xff]
      %v1153 = vld [vmem:[%s3 + $0xb0] sm:$0xff]
      %v1154 = vld [vmem:[%s3 + $0xb8] sm:$0xff]
      %v1155 = vld [vmem:[%s3 + $0xc0] sm:$0xff]
      %v1156 = vld [vmem:[%s3 + $0xc8] sm:$0xff]
      %v1157 = vld [vmem:[%s3 + $0xd0] sm:$0xff]
      %v1158 = vld [vmem:[%s3 + $0xd8] sm:$0xff]
      %v1159 = vld [vmem:[%s3 + $0xe0] sm:$0xff]
      %v1160 = vld [vmem:[%s3 + $0xe8] sm:$0xff]
      %v1161 = vld [vmem:[%s3 + $0xf0] sm:$0xff]
      %v1162 = vld [vmem:[%s3 + $0xf8] sm:$0xff]
      %v1163 = vld [vmem:[%s3 + $0x100] sm:$0xff]
      %v1164 = vld [vmem:[%s3 + $0x108] sm:$0xff]
      %v1165 = vld [vmem:[%s3 + $0x110] sm:$0xff]
      %v1166 = vld [vmem:[%s3 + $0x118] sm:$0xff]
      %v1167 = vld [vmem:[%s3 + $0x120] sm:$0xff]
      %v1168 = vld [vmem:[%s3 + $0x128] sm:$0xff]
      %v1169 = vld [vmem:[%s3 + $0x130] sm:$0xff]
      %v1170 = vld [vmem:[%s3 + $0x138] sm:$0xff]
      %v1171 = vld [vmem:[%s3 + $0x140] sm:$0xff]
      %v1172 = vld [vmem:[%s3 + $0x148] sm:$0xff]
      %v1173 = vld [vmem:[%s3 + $0x150] sm:$0xff]
      %v1174 = vld [vmem:[%s3 + $0x158] sm:$0xff]
      %v1175 = vld [vmem:[%s3 + $0x160] sm:$0xff]
      %v1176 = vld [vmem:[%s3 + $0x168] sm:$0xff]
      %v1177 = vld [vmem:[%s3 + $0x170] sm:$0xff]
      %v1178 = vld [vmem:[%s3 + $0x178] sm:$0xff]
      %v1179 = vld [vmem:[%s3 + $0x180] sm:$0xff]
      %v1180 = vld [vmem:[%s3 + $0x188] sm:$0xff]
      %v1181 = vld [vmem:[%s3 + $0x190] sm:$0xff]
      %v1182 = vld [vmem:[%s3 + $0x198] sm:$0xff]
      %v1183 = vld [vmem:[%s3 + $0x1a0] sm:$0xff]
      %v1184 = vld [vmem:[%s3 + $0x1a8] sm:$0xff]
      %v1185 = vld [vmem:[%s3 + $0x1b0] sm:$0xff]
      %v1186 = vld [vmem:[%s3 + $0x1b8] sm:$0xff]
      %v1187 = vld [vmem:[%s3 + $0x1c0] sm:$0xff]
      %v1188 = vld [vmem:[%s3 + $0x1c8] sm:$0xff]
      %v1189 = vld [vmem:[%s3 + $0x1d0] sm:$0xff]
      %v1190 = vld [vmem:[%s3 + $0x1d8] sm:$0xff]
      %v1191 = vld [vmem:[%s3 + $0x1e0] sm:$0xff]
      %v1192 = vld [vmem:[%s3 + $0x1e8] sm:$0xff]
      %v1193 = vld [vmem:[%s3 + $0x1f0] sm:$0xff]
      %v1194 = vld [vmem:[%s3 + $0x1f8] sm:$0xff]
      %v1195 = vld [vmem:[%s3 + $0x200] sm:$0xff]
      %v1196 = vld [vmem:[%s3 + $0x208] sm:$0xff]
      %v1197 = vld [vmem:[%s3 + $0x210] sm:$0xff]
      %v1198 = vld [vmem:[%s3 + $0x218] sm:$0xff]
      %v1199 = vld [vmem:[%s3 + $0x220] sm:$0xff]
      %v1200 = vld [vmem:[%s3 + $0x228] sm:$0xff]
      %v1201 = vld [vmem:[%s3 + $0x230] sm:$0xff]
      %v1202 = vld [vmem:[%s3 + $0x238] sm:$0xff]
      %v1203 = vld [vmem:[%s3 + $0x240] sm:$0xff]
      %v1204 = vld [vmem:[%s3 + $0x248] sm:$0xff]
      %v1205 = vld [vmem:[%s3 + $0x250] sm:$0xff]
      %v1206 = vld [vmem:[%s3 + $0x258] sm:$0xff]
      %v1207 = vld [vmem:[%s3 + $0x260] sm:$0xff]
      %v1208 = vld [vmem:[%s3 + $0x268] sm:$0xff]
      %v1209 = vld [vmem:[%s3 + $0x270] sm:$0xff]
      %v1210 = vld [vmem:[%s3 + $0x278] sm:$0xff]
      %v1211 = vld [vmem:[%s3 + $0x280] sm:$0xff]
      %v1212 = vld [vmem:[%s3 + $0x288] sm:$0xff]
      %v1213 = vld [vmem:[%s3 + $0x290] sm:$0xff]
      %v1214 = vld [vmem:[%s3 + $0x298] sm:$0xff]
      %v1215 = vld [vmem:[%s3 + $0x2a0] sm:$0xff]
      %v1216 = vld [vmem:[%s3 + $0x2a8] sm:$0xff]
      %v1217 = vld [vmem:[%s3 + $0x2b0] sm:$0xff]
      %v1218 = vld [vmem:[%s3 + $0x2b8] sm:$0xff]
      %v1219 = vld [vmem:[%s3 + $0x2c0] sm:$0xff]
      %v1220 = vld [vmem:[%s3 + $0x2c8] sm:$0xff]
      %v1221 = vld [vmem:[%s3 + $0x2d0] sm:$0xff]
      %v1222 = vld [vmem:[%s3 + $0x2d8] sm:$0xff]
      %v1223 = vld [vmem:[%s3 + $0x2e0] sm:$0xff]
      %v1224 = vld [vmem:[%s3 + $0x2e8] sm:$0xff]
      %v1225 = vld [vmem:[%s3 + $0x2f0] sm:$0xff]
      %v1226 = vld [vmem:[%s3 + $0x2f8] sm:$0xff]
      %v1227 = vld [vmem:[%s3 + $0x300] sm:$0xff]
      %v1228 = vld [vmem:[%s3 + $0x308] sm:$0xff]
      %v1229 = vld [vmem:[%s3 + $0x310] sm:$0xff]
      %v1230 = vld [vmem:[%s3 + $0x318] sm:$0xff]
      %v1231 = vld [vmem:[%s3 + $0x320] sm:$0xff]
      %v1232 = vld [vmem:[%s3 + $0x328] sm:$0xff]
      %v1233 = vld [vmem:[%s3 + $0x330] sm:$0xff]
      %v1234 = vld [vmem:[%s3 + $0x338] sm:$0xff]
      %v1235 = vld [vmem:[%s3 + $0x340] sm:$0xff]
      %v1236 = vld [vmem:[%s3 + $0x348] sm:$0xff]
      %v1237 = vld [vmem:[%s3 + $0x350] sm:$0xff]
      %v1238 = vld [vmem:[%s3 + $0x358] sm:$0xff]
      %v1239 = vld [vmem:[%s3 + $0x360] sm:$0xff]
      %v1240 = vld [vmem:[%s3 + $0x368] sm:$0xff]
      %v1241 = vld [vmem:[%s3 + $0x370] sm:$0xff]
      %v1242 = vld [vmem:[%s3 + $0x378] sm:$0xff]
      %v1243 = vld [vmem:[%s3 + $0x380] sm:$0xff]
      %v1244 = vld [vmem:[%s3 + $0x388] sm:$0xff]
      %v1245 = vld [vmem:[%s3 + $0x390] sm:$0xff]
      %v1246 = vld [vmem:[%s3 + $0x398] sm:$0xff]
      %v1247 = vld [vmem:[%s3 + $0x3a0] sm:$0xff]
      %v1248 = vld [vmem:[%s3 + $0x3a8] sm:$0xff]
      %v1249 = vld [vmem:[%s3 + $0x3b0] sm:$0xff]
      %v1250 = vld [vmem:[%s3 + $0x3b8] sm:$0xff]
      %v1251 = vld [vmem:[%s3 + $0x3c0] sm:$0xff]
      %v1252 = vld [vmem:[%s3 + $0x3c8] sm:$0xff]
      %v1253 = vld [vmem:[%s3 + $0x3d0] sm:$0xff]
      %v1254 = vld [vmem:[%s3 + $0x3d8] sm:$0xff]
      %v1255 = vld [vmem:[%s3 + $0x3e0] sm:$0xff]
      %v1256 = vld [vmem:[%s3 + $0x3e8] sm:$0xff]
      %v1257 = vld [vmem:[%s3 + $0x3f0] sm:$0xff]
      %v1258 = vld [vmem:[%s3 + $0x3f8] sm:$0xff]
      %v1259 = vld [vmem:[%s3 + $0x400] sm:$0xff]
      %v1260 = vld [vmem:[%s3 + $0x408] sm:$0xff]
      %v1261 = vld [vmem:[%s3 + $0x410] sm:$0xff]
      %v1262 = vld [vmem:[%s3 + $0x418] sm:$0xff]
      %v1263 = vld [vmem:[%s3 + $0x420] sm:$0xff]
      %v1264 = vld [vmem:[%s3 + $0x428] sm:$0xff]
      %v1265 = vld [vmem:[%s3 + $0x430] sm:$0xff]
      %v1266 = vld [vmem:[%s3 + $0x438] sm:$0xff]
      %v1267 = vld [vmem:[%s3 + $0x440] sm:$0xff]
      %v1268 = vld [vmem:[%s3 + $0x448] sm:$0xff]
      %v1269 = vld [vmem:[%s3 + $0x450] sm:$0xff]
      %v1270 = vld [vmem:[%s3 + $0x458] sm:$0xff]
      %v1271 = vld [vmem:[%s3 + $0x460] sm:$0xff]
      %v1272 = vld [vmem:[%s3 + $0x468] sm:$0xff]
      %v1273 = vld [vmem:[%s3 + $0x470] sm:$0xff]
      %v1274 = vld [vmem:[%s3 + $0x478] sm:$0xff]
      %v1275 = vld [vmem:[%s3 + $0x480] sm:$0xff]
      %v1276 = vld [vmem:[%s3 + $0x488] sm:$0xff]
      %v1277 = vld [vmem:[%s3 + $0x490] sm:$0xff]
      %v1278 = vld [vmem:[%s3 + $0x498] sm:$0xff]
      %v1279 = vld [vmem:[%s3 + $0x4a0] sm:$0xff]
      %v1280 = vld [vmem:[%s3 + $0x4a8] sm:$0xff]
      %v1281 = vld [vmem:[%s3 + $0x4b0] sm:$0xff]
      %v1282 = vld [vmem:[%s3 + $0x4b8] sm:$0xff]
      %v1283 = vld [vmem:[%s3 + $0x4c0] sm:$0xff]
      %v1284 = vld [vmem:[%s3 + $0x4c8] sm:$0xff]
      %v1285 = vld [vmem:[%s3 + $0x4d0] sm:$0xff]
      %v1286 = vld [vmem:[%s3 + $0x4d8] sm:$0xff]
      %v1287 = vld [vmem:[%s3 + $0x4e0] sm:$0xff]
      %v1288 = vld [vmem:[%s3 + $0x4e8] sm:$0xff]
      %v1289 = vld [vmem:[%s3 + $0x4f0] sm:$0xff]
      %v1290 = vld [vmem:[%s3 + $0x4f8] sm:$0xff]
      %v1291 = vld [vmem:[%s4] sm:$0xf]
      %v1293 = vperm.slane %v1291, 0
      %v1294 = vperm.slane %v1291, 1
      %v1295 = vperm.slane %v1291, 2
      %v1296 = vperm.slane %v1291, 3
      %v1461 = vunpack.c.l.b16 %v1131
      %v1462 = vunpack.c.h.b16 %v1131
      %v1463 = vunpack.c.l.b16 %v1132
      %v1464 = vunpack.c.h.b16 %v1132
      %v1465 = vunpack.c.l.b16 %v1133
      %v1466 = vunpack.c.h.b16 %v1133
      %v1467 = vunpack.c.l.b16 %v1134
      %v1468 = vunpack.c.h.b16 %v1134
      %v1469 = vunpack.c.l.b16 %v1135
      %v1470 = vunpack.c.h.b16 %v1135
      %v1471 = vunpack.c.l.b16 %v1136
      %v1472 = vunpack.c.h.b16 %v1136
      %v1473 = vunpack.c.l.b16 %v1137
      %v1474 = vunpack.c.h.b16 %v1137
      %v1475 = vunpack.c.l.b16 %v1138
      %v1476 = vunpack.c.h.b16 %v1138
      %v1477 = vunpack.c.l.b16 %v1139
      %v1478 = vunpack.c.h.b16 %v1139
      %v1479 = vunpack.c.l.b16 %v1140
      %v1480 = vunpack.c.h.b16 %v1140
      %v1481 = vunpack.c.l.b16 %v1141
      %v1482 = vunpack.c.h.b16 %v1141
      %v1483 = vunpack.c.l.b16 %v1142
      %v1484 = vunpack.c.h.b16 %v1142
      %v1485 = vunpack.c.l.b16 %v1143
      %v1486 = vunpack.c.h.b16 %v1143
      %v1487 = vunpack.c.l.b16 %v1144
      %v1488 = vunpack.c.h.b16 %v1144
      %v1489 = vunpack.c.l.b16 %v1145
      %v1490 = vunpack.c.h.b16 %v1145
      %v1491 = vunpack.c.l.b16 %v1146
      %v1492 = vunpack.c.h.b16 %v1146
      %v1493 = vunpack.c.l.b16 %v1147
      %v1494 = vunpack.c.h.b16 %v1147
      %v1495 = vunpack.c.l.b16 %v1148
      %v1496 = vunpack.c.h.b16 %v1148
      %v1497 = vunpack.c.l.b16 %v1149
      %v1498 = vunpack.c.h.b16 %v1149
      %v1499 = vunpack.c.l.b16 %v1150
      %v1500 = vunpack.c.h.b16 %v1150
      %v1501 = vunpack.c.l.b16 %v1151
      %v1502 = vunpack.c.h.b16 %v1151
      %v1503 = vunpack.c.l.b16 %v1152
      %v1504 = vunpack.c.h.b16 %v1152
      %v1505 = vunpack.c.l.b16 %v1153
      %v1506 = vunpack.c.h.b16 %v1153
      %v1507 = vunpack.c.l.b16 %v1154
      %v1508 = vunpack.c.h.b16 %v1154
      %v1509 = vunpack.c.l.b16 %v1155
      %v1510 = vunpack.c.h.b16 %v1155
      %v1511 = vunpack.c.l.b16 %v1156
      %v1512 = vunpack.c.h.b16 %v1156
      %v1513 = vunpack.c.l.b16 %v1157
      %v1514 = vunpack.c.h.b16 %v1157
      %v1515 = vunpack.c.l.b16 %v1158
      %v1516 = vunpack.c.h.b16 %v1158
      %v1517 = vunpack.c.l.b16 %v1159
      %v1518 = vunpack.c.h.b16 %v1159
      %v1519 = vunpack.c.l.b16 %v1160
      %v1520 = vunpack.c.h.b16 %v1160
      %v1521 = vunpack.c.l.b16 %v1161
      %v1522 = vunpack.c.h.b16 %v1161
      %v1523 = vunpack.c.l.b16 %v1162
      %v1524 = vunpack.c.h.b16 %v1162
      %v1525 = vunpack.c.l.b16 %v1163
      %v1526 = vunpack.c.h.b16 %v1163
      %v1527 = vunpack.c.l.b16 %v1164
      %v1528 = vunpack.c.h.b16 %v1164
      %v1529 = vunpack.c.l.b16 %v1165
      %v1530 = vunpack.c.h.b16 %v1165
      %v1531 = vunpack.c.l.b16 %v1166
      %v1532 = vunpack.c.h.b16 %v1166
      %v1533 = vunpack.c.l.b16 %v1167
      %v1534 = vunpack.c.h.b16 %v1167
      %v1535 = vunpack.c.l.b16 %v1168
      %v1536 = vunpack.c.h.b16 %v1168
      %v1537 = vunpack.c.l.b16 %v1169
      %v1538 = vunpack.c.h.b16 %v1169
      %v1539 = vunpack.c.l.b16 %v1170
      %v1540 = vunpack.c.h.b16 %v1170
      %v1541 = vunpack.c.l.b16 %v1171
      %v1542 = vunpack.c.h.b16 %v1171
      %v1543 = vunpack.c.l.b16 %v1172
      %v1544 = vunpack.c.h.b16 %v1172
      %v1545 = vunpack.c.l.b16 %v1173
      %v1546 = vunpack.c.h.b16 %v1173
      %v1547 = vunpack.c.l.b16 %v1174
      %v1548 = vunpack.c.h.b16 %v1174
      %v1549 = vunpack.c.l.b16 %v1175
      %v1550 = vunpack.c.h.b16 %v1175
      %v1551 = vunpack.c.l.b16 %v1176
      %v1552 = vunpack.c.h.b16 %v1176
      %v1553 = vunpack.c.l.b16 %v1177
      %v1554 = vunpack.c.h.b16 %v1177
      %v1555 = vunpack.c.l.b16 %v1178
      %v1556 = vunpack.c.h.b16 %v1178
      %v1557 = vunpack.c.l.b16 %v1179
      %v1558 = vunpack.c.h.b16 %v1179
      %v1559 = vunpack.c.l.b16 %v1180
      %v1560 = vunpack.c.h.b16 %v1180
      %v1561 = vunpack.c.l.b16 %v1181
      %v1562 = vunpack.c.h.b16 %v1181
      %v1563 = vunpack.c.l.b16 %v1182
      %v1564 = vunpack.c.h.b16 %v1182
      %v1565 = vunpack.c.l.b16 %v1183
      %v1566 = vunpack.c.h.b16 %v1183
      %v1567 = vunpack.c.l.b16 %v1184
      %v1568 = vunpack.c.h.b16 %v1184
      %v1569 = vunpack.c.l.b16 %v1185
      %v1570 = vunpack.c.h.b16 %v1185
      %v1571 = vunpack.c.l.b16 %v1186
      %v1572 = vunpack.c.h.b16 %v1186
      %v1573 = vunpack.c.l.b16 %v1187
      %v1574 = vunpack.c.h.b16 %v1187
      %v1575 = vunpack.c.l.b16 %v1188
      %v1576 = vunpack.c.h.b16 %v1188
      %v1577 = vunpack.c.l.b16 %v1189
      %v1578 = vunpack.c.h.b16 %v1189
      %v1579 = vunpack.c.l.b16 %v1190
      %v1580 = vunpack.c.h.b16 %v1190
      %v1581 = vunpack.c.l.b16 %v1191
      %v1582 = vunpack.c.h.b16 %v1191
      %v1583 = vunpack.c.l.b16 %v1192
      %v1584 = vunpack.c.h.b16 %v1192
      %v1585 = vunpack.c.l.b16 %v1193
      %v1586 = vunpack.c.h.b16 %v1193
      %v1587 = vunpack.c.l.b16 %v1194
      %v1588 = vunpack.c.h.b16 %v1194
      %v1589 = vunpack.c.l.b16 %v1195
      %v1590 = vunpack.c.h.b16 %v1195
      %v1591 = vunpack.c.l.b16 %v1196
      %v1592 = vunpack.c.h.b16 %v1196
      %v1593 = vunpack.c.l.b16 %v1197
      %v1594 = vunpack.c.h.b16 %v1197
      %v1595 = vunpack.c.l.b16 %v1198
      %v1596 = vunpack.c.h.b16 %v1198
      %v1597 = vunpack.c.l.b16 %v1199
      %v1598 = vunpack.c.h.b16 %v1199
      %v1599 = vunpack.c.l.b16 %v1200
      %v1600 = vunpack.c.h.b16 %v1200
      %v1601 = vunpack.c.l.b16 %v1201
      %v1602 = vunpack.c.h.b16 %v1201
      %v1603 = vunpack.c.l.b16 %v1202
      %v1604 = vunpack.c.h.b16 %v1202
      %v1605 = vunpack.c.l.b16 %v1203
      %v1606 = vunpack.c.h.b16 %v1203
      %v1607 = vunpack.c.l.b16 %v1204
      %v1608 = vunpack.c.h.b16 %v1204
      %v1609 = vunpack.c.l.b16 %v1205
      %v1610 = vunpack.c.h.b16 %v1205
      %v1611 = vunpack.c.l.b16 %v1206
      %v1612 = vunpack.c.h.b16 %v1206
      %v1613 = vunpack.c.l.b16 %v1207
      %v1614 = vunpack.c.h.b16 %v1207
      %v1615 = vunpack.c.l.b16 %v1208
      %v1616 = vunpack.c.h.b16 %v1208
      %v1617 = vunpack.c.l.b16 %v1209
      %v1618 = vunpack.c.h.b16 %v1209
      %v1619 = vunpack.c.l.b16 %v1210
      %v1620 = vunpack.c.h.b16 %v1210
      %v1621 = vunpack.c.l.b16 %v1211
      %v1622 = vunpack.c.h.b16 %v1211
      %v1623 = vunpack.c.l.b16 %v1212
      %v1624 = vunpack.c.h.b16 %v1212
      %v1625 = vunpack.c.l.b16 %v1213
      %v1626 = vunpack.c.h.b16 %v1213
      %v1627 = vunpack.c.l.b16 %v1214
      %v1628 = vunpack.c.h.b16 %v1214
      %v1629 = vunpack.c.l.b16 %v1215
      %v1630 = vunpack.c.h.b16 %v1215
      %v1631 = vunpack.c.l.b16 %v1216
      %v1632 = vunpack.c.h.b16 %v1216
      %v1633 = vunpack.c.l.b16 %v1217
      %v1634 = vunpack.c.h.b16 %v1217
      %v1635 = vunpack.c.l.b16 %v1218
      %v1636 = vunpack.c.h.b16 %v1218
      %v1637 = vunpack.c.l.b16 %v1219
      %v1638 = vunpack.c.h.b16 %v1219
      %v1639 = vunpack.c.l.b16 %v1220
      %v1640 = vunpack.c.h.b16 %v1220
      %v1641 = vunpack.c.l.b16 %v1221
      %v1642 = vunpack.c.h.b16 %v1221
      %v1643 = vunpack.c.l.b16 %v1222
      %v1644 = vunpack.c.h.b16 %v1222
      %v1645 = vunpack.c.l.b16 %v1223
      %v1646 = vunpack.c.h.b16 %v1223
      %v1647 = vunpack.c.l.b16 %v1224
      %v1648 = vunpack.c.h.b16 %v1224
      %v1649 = vunpack.c.l.b16 %v1225
      %v1650 = vunpack.c.h.b16 %v1225
      %v1651 = vunpack.c.l.b16 %v1226
      %v1652 = vunpack.c.h.b16 %v1226
      %v1653 = vunpack.c.l.b16 %v1227
      %v1654 = vunpack.c.h.b16 %v1227
      %v1655 = vunpack.c.l.b16 %v1228
      %v1656 = vunpack.c.h.b16 %v1228
      %v1657 = vunpack.c.l.b16 %v1229
      %v1658 = vunpack.c.h.b16 %v1229
      %v1659 = vunpack.c.l.b16 %v1230
      %v1660 = vunpack.c.h.b16 %v1230
      %v1661 = vunpack.c.l.b16 %v1231
      %v1662 = vunpack.c.h.b16 %v1231
      %v1663 = vunpack.c.l.b16 %v1232
      %v1664 = vunpack.c.h.b16 %v1232
      %v1665 = vunpack.c.l.b16 %v1233
      %v1666 = vunpack.c.h.b16 %v1233
      %v1667 = vunpack.c.l.b16 %v1234
      %v1668 = vunpack.c.h.b16 %v1234
      %v1669 = vunpack.c.l.b16 %v1235
      %v1670 = vunpack.c.h.b16 %v1235
      %v1671 = vunpack.c.l.b16 %v1236
      %v1672 = vunpack.c.h.b16 %v1236
      %v1673 = vunpack.c.l.b16 %v1237
      %v1674 = vunpack.c.h.b16 %v1237
      %v1675 = vunpack.c.l.b16 %v1238
      %v1676 = vunpack.c.h.b16 %v1238
      %v1677 = vunpack.c.l.b16 %v1239
      %v1678 = vunpack.c.h.b16 %v1239
      %v1679 = vunpack.c.l.b16 %v1240
      %v1680 = vunpack.c.h.b16 %v1240
      %v1681 = vunpack.c.l.b16 %v1241
      %v1682 = vunpack.c.h.b16 %v1241
      %v1683 = vunpack.c.l.b16 %v1242
      %v1684 = vunpack.c.h.b16 %v1242
      %v1685 = vunpack.c.l.b16 %v1243
      %v1686 = vunpack.c.h.b16 %v1243
      %v1687 = vunpack.c.l.b16 %v1244
      %v1688 = vunpack.c.h.b16 %v1244
      %v1689 = vunpack.c.l.b16 %v1245
      %v1690 = vunpack.c.h.b16 %v1245
      %v1691 = vunpack.c.l.b16 %v1246
      %v1692 = vunpack.c.h.b16 %v1246
      %v1693 = vunpack.c.l.b16 %v1247
      %v1694 = vunpack.c.h.b16 %v1247
      %v1695 = vunpack.c.l.b16 %v1248
      %v1696 = vunpack.c.h.b16 %v1248
      %v1697 = vunpack.c.l.b16 %v1249
      %v1698 = vunpack.c.h.b16 %v1249
      %v1699 = vunpack.c.l.b16 %v1250
      %v1700 = vunpack.c.h.b16 %v1250
      %v1701 = vunpack.c.l.b16 %v1251
      %v1702 = vunpack.c.h.b16 %v1251
      %v1703 = vunpack.c.l.b16 %v1252
      %v1704 = vunpack.c.h.b16 %v1252
      %v1705 = vunpack.c.l.b16 %v1253
      %v1706 = vunpack.c.h.b16 %v1253
      %v1707 = vunpack.c.l.b16 %v1254
      %v1708 = vunpack.c.h.b16 %v1254
      %v1709 = vunpack.c.l.b16 %v1255
      %v1710 = vunpack.c.h.b16 %v1255
      %v1711 = vunpack.c.l.b16 %v1256
      %v1712 = vunpack.c.h.b16 %v1256
      %v1713 = vunpack.c.l.b16 %v1257
      %v1714 = vunpack.c.h.b16 %v1257
      %v1715 = vunpack.c.l.b16 %v1258
      %v1716 = vunpack.c.h.b16 %v1258
      %v1717 = vunpack.c.l.b16 %v1259
      %v1718 = vunpack.c.h.b16 %v1259
      %v1719 = vunpack.c.l.b16 %v1260
      %v1720 = vunpack.c.h.b16 %v1260
      %v1721 = vunpack.c.l.b16 %v1261
      %v1722 = vunpack.c.h.b16 %v1261
      %v1723 = vunpack.c.l.b16 %v1262
      %v1724 = vunpack.c.h.b16 %v1262
      %v1725 = vunpack.c.l.b16 %v1263
      %v1726 = vunpack.c.h.b16 %v1263
      %v1727 = vunpack.c.l.b16 %v1264
      %v1728 = vunpack.c.h.b16 %v1264
      %v1729 = vunpack.c.l.b16 %v1265
      %v1730 = vunpack.c.h.b16 %v1265
      %v1731 = vunpack.c.l.b16 %v1266
      %v1732 = vunpack.c.h.b16 %v1266
      %v1733 = vunpack.c.l.b16 %v1267
      %v1734 = vunpack.c.h.b16 %v1267
      %v1735 = vunpack.c.l.b16 %v1268
      %v1736 = vunpack.c.h.b16 %v1268
      %v1737 = vunpack.c.l.b16 %v1269
      %v1738 = vunpack.c.h.b16 %v1269
      %v1739 = vunpack.c.l.b16 %v1270
      %v1740 = vunpack.c.h.b16 %v1270
      %v1741 = vunpack.c.l.b16 %v1271
      %v1742 = vunpack.c.h.b16 %v1271
      %v1743 = vunpack.c.l.b16 %v1272
      %v1744 = vunpack.c.h.b16 %v1272
      %v1745 = vunpack.c.l.b16 %v1273
      %v1746 = vunpack.c.h.b16 %v1273
      %v1747 = vunpack.c.l.b16 %v1274
      %v1748 = vunpack.c.h.b16 %v1274
      %v1749 = vunpack.c.l.b16 %v1275
      %v1750 = vunpack.c.h.b16 %v1275
      %v1751 = vunpack.c.l.b16 %v1276
      %v1752 = vunpack.c.h.b16 %v1276
      %v1753 = vunpack.c.l.b16 %v1277
      %v1754 = vunpack.c.h.b16 %v1277
      %v1755 = vunpack.c.l.b16 %v1278
      %v1756 = vunpack.c.h.b16 %v1278
      %v1757 = vunpack.c.l.b16 %v1279
      %v1758 = vunpack.c.h.b16 %v1279
      %v1759 = vunpack.c.l.b16 %v1280
      %v1760 = vunpack.c.h.b16 %v1280
      %v1761 = vunpack.c.l.b16 %v1281
      %v1762 = vunpack.c.h.b16 %v1281
      %v1763 = vunpack.c.l.b16 %v1282
      %v1764 = vunpack.c.h.b16 %v1282
      %v1765 = vunpack.c.l.b16 %v1283
      %v1766 = vunpack.c.h.b16 %v1283
      %v1767 = vunpack.c.l.b16 %v1284
      %v1768 = vunpack.c.h.b16 %v1284
      %v1769 = vunpack.c.l.b16 %v1285
      %v1770 = vunpack.c.h.b16 %v1285
      %v1771 = vunpack.c.l.b16 %v1286
      %v1772 = vunpack.c.h.b16 %v1286
      %v1773 = vunpack.c.l.b16 %v1287
      %v1774 = vunpack.c.h.b16 %v1287
      %v1775 = vunpack.c.l.b16 %v1288
      %v1776 = vunpack.c.h.b16 %v1288
      %v1777 = vunpack.c.l.b16 %v1289
      %v1778 = vunpack.c.h.b16 %v1289
      %v1779 = vunpack.c.l.b16 %v1290
      %v1780 = vunpack.c.h.b16 %v1290
      %v1781 = vpack.c.b16 %v1465, %v1461
      %v1782 = vpack.c.b16 %v1466, %v1462
      %v1783 = vpack.c.b16 %v1467, %v1463
      %v1784 = vpack.c.b16 %v1468, %v1464
      %v1785 = vpack.c.b16 %v1473, %v1469
      %v1786 = vpack.c.b16 %v1474, %v1470
      %v1787 = vpack.c.b16 %v1475, %v1471
      %v1788 = vpack.c.b16 %v1476, %v1472
      %v1789 = vpack.c.b16 %v1481, %v1477
      %v1790 = vpack.c.b16 %v1482, %v1478
      %v1791 = vpack.c.b16 %v1483, %v1479
      %v1792 = vpack.c.b16 %v1484, %v1480
      %v1793 = vpack.c.b16 %v1489, %v1485
      %v1794 = vpack.c.b16 %v1490, %v1486
      %v1795 = vpack.c.b16 %v1491, %v1487
      %v1796 = vpack.c.b16 %v1492, %v1488
      %v1797 = vpack.c.b16 %v1497, %v1493
      %v1798 = vpack.c.b16 %v1498, %v1494
      %v1799 = vpack.c.b16 %v1499, %v1495
      %v1800 = vpack.c.b16 %v1500, %v1496
      %v1801 = vpack.c.b16 %v1505, %v1501
      %v1802 = vpack.c.b16 %v1506, %v1502
      %v1803 = vpack.c.b16 %v1507, %v1503
      %v1804 = vpack.c.b16 %v1508, %v1504
      %v1805 = vpack.c.b16 %v1513, %v1509
      %v1806 = vpack.c.b16 %v1514, %v1510
      %v1807 = vpack.c.b16 %v1515, %v1511
      %v1808 = vpack.c.b16 %v1516, %v1512
      %v1809 = vpack.c.b16 %v1521, %v1517
      %v1810 = vpack.c.b16 %v1522, %v1518
      %v1811 = vpack.c.b16 %v1523, %v1519
      %v1812 = vpack.c.b16 %v1524, %v1520
      %v1813 = vpack.c.b16 %v1529, %v1525
      %v1814 = vpack.c.b16 %v1530, %v1526
      %v1815 = vpack.c.b16 %v1531, %v1527
      %v1816 = vpack.c.b16 %v1532, %v1528
      %v1817 = vpack.c.b16 %v1537, %v1533
      %v1818 = vpack.c.b16 %v1538, %v1534
      %v1819 = vpack.c.b16 %v1539, %v1535
      %v1820 = vpack.c.b16 %v1540, %v1536
      %v1821 = vpack.c.b16 %v1545, %v1541
      %v1822 = vpack.c.b16 %v1546, %v1542
      %v1823 = vpack.c.b16 %v1547, %v1543
      %v1824 = vpack.c.b16 %v1548, %v1544
      %v1825 = vpack.c.b16 %v1553, %v1549
      %v1826 = vpack.c.b16 %v1554, %v1550
      %v1827 = vpack.c.b16 %v1555, %v1551
      %v1828 = vpack.c.b16 %v1556, %v1552
      %v1829 = vpack.c.b16 %v1561, %v1557
      %v1830 = vpack.c.b16 %v1562, %v1558
      %v1831 = vpack.c.b16 %v1563, %v1559
      %v1832 = vpack.c.b16 %v1564, %v1560
      %v1833 = vpack.c.b16 %v1569, %v1565
      %v1834 = vpack.c.b16 %v1570, %v1566
      %v1835 = vpack.c.b16 %v1571, %v1567
      %v1836 = vpack.c.b16 %v1572, %v1568
      %v1837 = vpack.c.b16 %v1577, %v1573
      %v1838 = vpack.c.b16 %v1578, %v1574
      %v1839 = vpack.c.b16 %v1579, %v1575
      %v1840 = vpack.c.b16 %v1580, %v1576
      %v1841 = vpack.c.b16 %v1585, %v1581
      %v1842 = vpack.c.b16 %v1586, %v1582
      %v1843 = vpack.c.b16 %v1587, %v1583
      %v1844 = vpack.c.b16 %v1588, %v1584
      %v1845 = vpack.c.b16 %v1593, %v1589
      %v1846 = vpack.c.b16 %v1594, %v1590
      %v1847 = vpack.c.b16 %v1595, %v1591
      %v1848 = vpack.c.b16 %v1596, %v1592
      %v1849 = vpack.c.b16 %v1601, %v1597
      %v1850 = vpack.c.b16 %v1602, %v1598
      %v1851 = vpack.c.b16 %v1603, %v1599
      %v1852 = vpack.c.b16 %v1604, %v1600
      %v1853 = vpack.c.b16 %v1609, %v1605
      %v1854 = vpack.c.b16 %v1610, %v1606
      %v1855 = vpack.c.b16 %v1611, %v1607
      %v1856 = vpack.c.b16 %v1612, %v1608
      %v1857 = vpack.c.b16 %v1617, %v1613
      %v1858 = vpack.c.b16 %v1618, %v1614
      %v1859 = vpack.c.b16 %v1619, %v1615
      %v1860 = vpack.c.b16 %v1620, %v1616
      %v1861 = vpack.c.b16 %v1625, %v1621
      %v1862 = vpack.c.b16 %v1626, %v1622
      %v1863 = vpack.c.b16 %v1627, %v1623
      %v1864 = vpack.c.b16 %v1628, %v1624
      %v1865 = vpack.c.b16 %v1633, %v1629
      %v1866 = vpack.c.b16 %v1634, %v1630
      %v1867 = vpack.c.b16 %v1635, %v1631
      %v1868 = vpack.c.b16 %v1636, %v1632
      %v1869 = vpack.c.b16 %v1641, %v1637
      %v1870 = vpack.c.b16 %v1642, %v1638
      %v1871 = vpack.c.b16 %v1643, %v1639
      %v1872 = vpack.c.b16 %v1644, %v1640
      %v1873 = vpack.c.b16 %v1649, %v1645
      %v1874 = vpack.c.b16 %v1650, %v1646
      %v1875 = vpack.c.b16 %v1651, %v1647
      %v1876 = vpack.c.b16 %v1652, %v1648
      %v1877 = vpack.c.b16 %v1657, %v1653
      %v1878 = vpack.c.b16 %v1658, %v1654
      %v1879 = vpack.c.b16 %v1659, %v1655
      %v1880 = vpack.c.b16 %v1660, %v1656
      %v1881 = vpack.c.b16 %v1665, %v1661
      %v1882 = vpack.c.b16 %v1666, %v1662
      %v1883 = vpack.c.b16 %v1667, %v1663
      %v1884 = vpack.c.b16 %v1668, %v1664
      %v1885 = vpack.c.b16 %v1673, %v1669
      %v1886 = vpack.c.b16 %v1674, %v1670
      %v1887 = vpack.c.b16 %v1675, %v1671
      %v1888 = vpack.c.b16 %v1676, %v1672
      %v1889 = vpack.c.b16 %v1681, %v1677
      %v1890 = vpack.c.b16 %v1682, %v1678
      %v1891 = vpack.c.b16 %v1683, %v1679
      %v1892 = vpack.c.b16 %v1684, %v1680
      %v1893 = vpack.c.b16 %v1689, %v1685
      %v1894 = vpack.c.b16 %v1690, %v1686
      %v1895 = vpack.c.b16 %v1691, %v1687
      %v1896 = vpack.c.b16 %v1692, %v1688
      %v1897 = vpack.c.b16 %v1697, %v1693
      %v1898 = vpack.c.b16 %v1698, %v1694
      %v1899 = vpack.c.b16 %v1699, %v1695
      %v1900 = vpack.c.b16 %v1700, %v1696
      %v1901 = vpack.c.b16 %v1705, %v1701
      %v1902 = vpack.c.b16 %v1706, %v1702
      %v1903 = vpack.c.b16 %v1707, %v1703
      %v1904 = vpack.c.b16 %v1708, %v1704
      %v1905 = vpack.c.b16 %v1713, %v1709
      %v1906 = vpack.c.b16 %v1714, %v1710
      %v1907 = vpack.c.b16 %v1715, %v1711
      %v1908 = vpack.c.b16 %v1716, %v1712
      %v1909 = vpack.c.b16 %v1721, %v1717
      %v1910 = vpack.c.b16 %v1722, %v1718
      %v1911 = vpack.c.b16 %v1723, %v1719
      %v1912 = vpack.c.b16 %v1724, %v1720
      %v1913 = vpack.c.b16 %v1729, %v1725
      %v1914 = vpack.c.b16 %v1730, %v1726
      %v1915 = vpack.c.b16 %v1731, %v1727
      %v1916 = vpack.c.b16 %v1732, %v1728
      %v1917 = vpack.c.b16 %v1737, %v1733
      %v1918 = vpack.c.b16 %v1738, %v1734
      %v1919 = vpack.c.b16 %v1739, %v1735
      %v1920 = vpack.c.b16 %v1740, %v1736
      %v1921 = vpack.c.b16 %v1745, %v1741
      %v1922 = vpack.c.b16 %v1746, %v1742
      %v1923 = vpack.c.b16 %v1747, %v1743
      %v1924 = vpack.c.b16 %v1748, %v1744
      %v1925 = vpack.c.b16 %v1753, %v1749
      %v1926 = vpack.c.b16 %v1754, %v1750
      %v1927 = vpack.c.b16 %v1755, %v1751
      %v1928 = vpack.c.b16 %v1756, %v1752
      %v1929 = vpack.c.b16 %v1761, %v1757
      %v1930 = vpack.c.b16 %v1762, %v1758
      %v1931 = vpack.c.b16 %v1763, %v1759
      %v1932 = vpack.c.b16 %v1764, %v1760
      %v1933 = vpack.c.b16 %v1769, %v1765
      %v1934 = vpack.c.b16 %v1770, %v1766
      %v1935 = vpack.c.b16 %v1771, %v1767
      %v1936 = vpack.c.b16 %v1772, %v1768
      %v1937 = vpack.c.b16 %v1777, %v1773
      %v1938 = vpack.c.b16 %v1778, %v1774
      %v1939 = vpack.c.b16 %v1779, %v1775
      %v1940 = vpack.c.b16 %v1780, %v1776
      %2101 = vmatpush.bf16.msra.mxu0 %v1809
      %2102 = vmatpush.bf16.msra.mxu0 %v1805
      %2103 = vmatpush.bf16.msra.mxu0 %v1801
      %2104 = vmatpush.bf16.msra.mxu0 %v1797
      %2105 = vmatpush.bf16.msra.mxu0 %v1793
      %2106 = vmatpush.bf16.msra.mxu0 %v1789
      %2107 = vmatpush.bf16.msra.mxu0 %v1785
      %2108 = vmatpush.bf16.msra.mxu0 %v1781
      %2109 = vmatmul.bf16.gmra.mxu0 %v1126
      %v2110 = vpop.f32.mrf.mxu0
      %v2111 = vadd.f32 %v1293, %v2110
      %v2112 = vpop.f32.mrf.mxu0
      %v2113 = vadd.f32 %v1293, %v2112
      %2114 = vdwg.mxu0
      %2115 = vmatpush.bf16.msra.mxu0 %v1841
      %2116 = vmatpush.bf16.msra.mxu0 %v1837
      %2117 = vmatpush.bf16.msra.mxu0 %v1833
      %2118 = vmatpush.bf16.msra.mxu0 %v1829
      %2119 = vmatpush.bf16.msra.mxu0 %v1825
      %2120 = vmatpush.bf16.msra.mxu0 %v1821
      %2121 = vmatpush.bf16.msra.mxu0 %v1817
      %2122 = vmatpush.bf16.msra.mxu0 %v1813
      %2123 = vmatmul.bf16.gmra.mxu0 %v1127
      %v2124 = vpop.f32.mrf.mxu0
      %v2125 = vadd.f32 %v2111, %v2124
      %v2126 = vpop.f32.mrf.mxu0
      %v2127 = vadd.f32 %v2113, %v2126
      %2128 = vdwg.mxu0
      %2129 = vmatpush.bf16.msra.mxu0 %v1873
      %2130 = vmatpush.bf16.msra.mxu0 %v1869
      %2131 = vmatpush.bf16.msra.mxu0 %v1865
      %2132 = vmatpush.bf16.msra.mxu0 %v1861
      %2133 = vmatpush.bf16.msra.mxu0 %v1857
      %2134 = vmatpush.bf16.msra.mxu0 %v1853
      %2135 = vmatpush.bf16.msra.mxu0 %v1849
      %2136 = vmatpush.bf16.msra.mxu0 %v1845
      %2137 = vmatmul.bf16.gmra.mxu0 %v1128
      %v2138 = vpop.f32.mrf.mxu0
      %v2139 = vadd.f32 %v2125, %v2138
      %v2140 = vpop.f32.mrf.mxu0
      %v2141 = vadd.f32 %v2127, %v2140
      %2142 = vdwg.mxu0
      %2143 = vmatpush.bf16.msra.mxu0 %v1905
      %2144 = vmatpush.bf16.msra.mxu0 %v1901
      %2145 = vmatpush.bf16.msra.mxu0 %v1897
      %2146 = vmatpush.bf16.msra.mxu0 %v1893
      %2147 = vmatpush.bf16.msra.mxu0 %v1889
      %2148 = vmatpush.bf16.msra.mxu0 %v1885
      %2149 = vmatpush.bf16.msra.mxu0 %v1881
      %2150 = vmatpush.bf16.msra.mxu0 %v1877
      %2151 = vmatmul.bf16.gmra.mxu0 %v1129
      %v2152 = vpop.f32.mrf.mxu0
      %v2153 = vadd.f32 %v2139, %v2152
      %v2154 = vpop.f32.mrf.mxu0
      %v2155 = vadd.f32 %v2141, %v2154
      %2156 = vdwg.mxu0
      %2157 = vmatpush.bf16.msra.mxu0 %v1937
      %2158 = vmatpush.bf16.msra.mxu0 %v1933
      %2159 = vmatpush.bf16.msra.mxu0 %v1929
      %2160 = vmatpush.bf16.msra.mxu0 %v1925
      %2161 = vmatpush.bf16.msra.mxu0 %v1921
      %2162 = vmatpush.bf16.msra.mxu0 %v1917
      %2163 = vmatpush.bf16.msra.mxu0 %v1913
      %2164 = vmatpush.bf16.msra.mxu0 %v1909
      %2165 = vmatmul.bf16.gmra.mxu0 %v1130
      %v2166 = vpop.f32.mrf.mxu0
      %v2167 = vadd.f32 %v2153, %v2166
      %v2168 = vpop.f32.mrf.mxu0
      %v2169 = vadd.f32 %v2155, %v2168
      %2170 = vdwg.mxu0
      %2171 = vmatpush.bf16.msra.mxu0 %v1810
      %2172 = vmatpush.bf16.msra.mxu0 %v1806
      %2173 = vmatpush.bf16.msra.mxu0 %v1802
      %2174 = vmatpush.bf16.msra.mxu0 %v1798
      %2175 = vmatpush.bf16.msra.mxu0 %v1794
      %2176 = vmatpush.bf16.msra.mxu0 %v1790
      %2177 = vmatpush.bf16.msra.mxu0 %v1786
      %2178 = vmatpush.bf16.msra.mxu0 %v1782
      %2179 = vmatmul.bf16.gmra.mxu0 %v1126
      %v2180 = vpop.f32.mrf.mxu0
      %v2181 = vadd.f32 %v1294, %v2180
      %v2182 = vpop.f32.mrf.mxu0
      %v2183 = vadd.f32 %v1294, %v2182
      %2184 = vdwg.mxu0
      %2185 = vmatpush.bf16.msra.mxu0 %v1842
      %2186 = vmatpush.bf16.msra.mxu0 %v1838
      %2187 = vmatpush.bf16.msra.mxu0 %v1834
      %2188 = vmatpush.bf16.msra.mxu0 %v1830
      %2189 = vmatpush.bf16.msra.mxu0 %v1826
      %2190 = vmatpush.bf16.msra.mxu0 %v1822
      %2191 = vmatpush.bf16.msra.mxu0 %v1818
      %2192 = vmatpush.bf16.msra.mxu0 %v1814
      %2193 = vmatmul.bf16.gmra.mxu0 %v1127
      %v2194 = vpop.f32.mrf.mxu0
      %v2195 = vadd.f32 %v2181, %v2194
      %v2196 = vpop.f32.mrf.mxu0
      %v2197 = vadd.f32 %v2183, %v2196
      %2198 = vdwg.mxu0
      %2199 = vmatpush.bf16.msra.mxu0 %v1874
      %2200 = vmatpush.bf16.msra.mxu0 %v1870
      %2201 = vmatpush.bf16.msra.mxu0 %v1866
      %2202 = vmatpush.bf16.msra.mxu0 %v1862
      %2203 = vmatpush.bf16.msra.mxu0 %v1858
      %2204 = vmatpush.bf16.msra.mxu0 %v1854
      %2205 = vmatpush.bf16.msra.mxu0 %v1850
      %2206 = vmatpush.bf16.msra.mxu0 %v1846
      %2207 = vmatmul.bf16.gmra.mxu0 %v1128
      %v2208 = vpop.f32.mrf.mxu0
      %v2209 = vadd.f32 %v2195, %v2208
      %v2210 = vpop.f32.mrf.mxu0
      %v2211 = vadd.f32 %v2197, %v2210
      %2212 = vdwg.mxu0
      %2213 = vmatpush.bf16.msra.mxu0 %v1906
      %2214 = vmatpush.bf16.msra.mxu0 %v1902
      %2215 = vmatpush.bf16.msra.mxu0 %v1898
      %2216 = vmatpush.bf16.msra.mxu0 %v1894
      %2217 = vmatpush.bf16.msra.mxu0 %v1890
      %2218 = vmatpush.bf16.msra.mxu0 %v1886
      %2219 = vmatpush.bf16.msra.mxu0 %v1882
      %2220 = vmatpush.bf16.msra.mxu0 %v1878
      %2221 = vmatmul.bf16.gmra.mxu0 %v1129
      %v2222 = vpop.f32.mrf.mxu0
      %v2223 = vadd.f32 %v2209, %v2222
      %v2224 = vpop.f32.mrf.mxu0
      %v2225 = vadd.f32 %v2211, %v2224
      %2226 = vdwg.mxu0
      %2227 = vmatpush.bf16.msra.mxu0 %v1938
      %2228 = vmatpush.bf16.msra.mxu0 %v1934
      %2229 = vmatpush.bf16.msra.mxu0 %v1930
      %2230 = vmatpush.bf16.msra.mxu0 %v1926
      %2231 = vmatpush.bf16.msra.mxu0 %v1922
      %2232 = vmatpush.bf16.msra.mxu0 %v1918
      %2233 = vmatpush.bf16.msra.mxu0 %v1914
      %2234 = vmatpush.bf16.msra.mxu0 %v1910
      %2235 = vmatmul.bf16.gmra.mxu0 %v1130
      %v2236 = vpop.f32.mrf.mxu0
      %v2237 = vadd.f32 %v2223, %v2236
      %v2238 = vpop.f32.mrf.mxu0
      %v2239 = vadd.f32 %v2225, %v2238
      %2240 = vdwg.mxu0
      %2241 = vmatpush.bf16.msra.mxu0 %v1811
      %2242 = vmatpush.bf16.msra.mxu0 %v1807
      %2243 = vmatpush.bf16.msra.mxu0 %v1803
      %2244 = vmatpush.bf16.msra.mxu0 %v1799
      %2245 = vmatpush.bf16.msra.mxu0 %v1795
      %2246 = vmatpush.bf16.msra.mxu0 %v1791
      %2247 = vmatpush.bf16.msra.mxu0 %v1787
      %2248 = vmatpush.bf16.msra.mxu0 %v1783
      %2249 = vmatmul.bf16.gmra.mxu0 %v1126
      %v2250 = vpop.f32.mrf.mxu0
      %v2251 = vadd.f32 %v1295, %v2250
      %v2252 = vpop.f32.mrf.mxu0
      %v2253 = vadd.f32 %v1295, %v2252
      %2254 = vdwg.mxu0
      %2255 = vmatpush.bf16.msra.mxu0 %v1843
      %2256 = vmatpush.bf16.msra.mxu0 %v1839
      %2257 = vmatpush.bf16.msra.mxu0 %v1835
      %2258 = vmatpush.bf16.msra.mxu0 %v1831
      %2259 = vmatpush.bf16.msra.mxu0 %v1827
      %2260 = vmatpush.bf16.msra.mxu0 %v1823
      %2261 = vmatpush.bf16.msra.mxu0 %v1819
      %2262 = vmatpush.bf16.msra.mxu0 %v1815
      %2263 = vmatmul.bf16.gmra.mxu0 %v1127
      %v2264 = vpop.f32.mrf.mxu0
      %v2265 = vadd.f32 %v2251, %v2264
      %v2266 = vpop.f32.mrf.mxu0
      %v2267 = vadd.f32 %v2253, %v2266
      %2268 = vdwg.mxu0
      %2269 = vmatpush.bf16.msra.mxu0 %v1875
      %2270 = vmatpush.bf16.msra.mxu0 %v1871
      %2271 = vmatpush.bf16.msra.mxu0 %v1867
      %2272 = vmatpush.bf16.msra.mxu0 %v1863
      %2273 = vmatpush.bf16.msra.mxu0 %v1859
      %2274 = vmatpush.bf16.msra.mxu0 %v1855
      %2275 = vmatpush.bf16.msra.mxu0 %v1851
      %2276 = vmatpush.bf16.msra.mxu0 %v1847
      %2277 = vmatmul.bf16.gmra.mxu0 %v1128
      %v2278 = vpop.f32.mrf.mxu0
      %v2279 = vadd.f32 %v2265, %v2278
      %v2280 = vpop.f32.mrf.mxu0
      %v2281 = vadd.f32 %v2267, %v2280
      %2282 = vdwg.mxu0
      %2283 = vmatpush.bf16.msra.mxu0 %v1907
      %2284 = vmatpush.bf16.msra.mxu0 %v1903
      %2285 = vmatpush.bf16.msra.mxu0 %v1899
      %2286 = vmatpush.bf16.msra.mxu0 %v1895
      %2287 = vmatpush.bf16.msra.mxu0 %v1891
      %2288 = vmatpush.bf16.msra.mxu0 %v1887
      %2289 = vmatpush.bf16.msra.mxu0 %v1883
      %2290 = vmatpush.bf16.msra.mxu0 %v1879
      %2291 = vmatmul.bf16.gmra.mxu0 %v1129
      %v2292 = vpop.f32.mrf.mxu0
      %v2293 = vadd.f32 %v2279, %v2292
      %v2294 = vpop.f32.mrf.mxu0
      %v2295 = vadd.f32 %v2281, %v2294
      %2296 = vdwg.mxu0
      %2297 = vmatpush.bf16.msra.mxu0 %v1939
      %2298 = vmatpush.bf16.msra.mxu0 %v1935
      %2299 = vmatpush.bf16.msra.mxu0 %v1931
      %2300 = vmatpush.bf16.msra.mxu0 %v1927
      %2301 = vmatpush.bf16.msra.mxu0 %v1923
      %2302 = vmatpush.bf16.msra.mxu0 %v1919
      %2303 = vmatpush.bf16.msra.mxu0 %v1915
      %2304 = vmatpush.bf16.msra.mxu0 %v1911
      %2305 = vmatmul.bf16.gmra.mxu0 %v1130
      %v2306 = vpop.f32.mrf.mxu0
      %v2307 = vadd.f32 %v2293, %v2306
      %v2308 = vpop.f32.mrf.mxu0
      %v2309 = vadd.f32 %v2295, %v2308
      %2310 = vdwg.mxu0
      %2311 = vmatpush.bf16.msra.mxu0 %v1812
      %2312 = vmatpush.bf16.msra.mxu0 %v1808
      %2313 = vmatpush.bf16.msra.mxu0 %v1804
      %2314 = vmatpush.bf16.msra.mxu0 %v1800
      %2315 = vmatpush.bf16.msra.mxu0 %v1796
      %2316 = vmatpush.bf16.msra.mxu0 %v1792
      %2317 = vmatpush.bf16.msra.mxu0 %v1788
      %2318 = vmatpush.bf16.msra.mxu0 %v1784
      %2319 = vmatmul.bf16.gmra.mxu0 %v1126
      %v2320 = vpop.f32.mrf.mxu0
      %v2321 = vadd.f32 %v1296, %v2320
      %v2322 = vpop.f32.mrf.mxu0
      %v2323 = vadd.f32 %v1296, %v2322
      %2324 = vdwg.mxu0
      %2325 = vmatpush.bf16.msra.mxu0 %v1844
      %2326 = vmatpush.bf16.msra.mxu0 %v1840
      %2327 = vmatpush.bf16.msra.mxu0 %v1836
      %2328 = vmatpush.bf16.msra.mxu0 %v1832
      %2329 = vmatpush.bf16.msra.mxu0 %v1828
      %2330 = vmatpush.bf16.msra.mxu0 %v1824
      %2331 = vmatpush.bf16.msra.mxu0 %v1820
      %2332 = vmatpush.bf16.msra.mxu0 %v1816
      %2333 = vmatmul.bf16.gmra.mxu0 %v1127
      %v2334 = vpop.f32.mrf.mxu0
      %v2335 = vadd.f32 %v2321, %v2334
      %v2336 = vpop.f32.mrf.mxu0
      %v2337 = vadd.f32 %v2323, %v2336
      %2338 = vdwg.mxu0
      %2339 = vmatpush.bf16.msra.mxu0 %v1876
      %2340 = vmatpush.bf16.msra.mxu0 %v1872
      %2341 = vmatpush.bf16.msra.mxu0 %v1868
      %2342 = vmatpush.bf16.msra.mxu0 %v1864
      %2343 = vmatpush.bf16.msra.mxu0 %v1860
      %2344 = vmatpush.bf16.msra.mxu0 %v1856
      %2345 = vmatpush.bf16.msra.mxu0 %v1852
      %2346 = vmatpush.bf16.msra.mxu0 %v1848
      %2347 = vmatmul.bf16.gmra.mxu0 %v1128
      %v2348 = vpop.f32.mrf.mxu0
      %v2349 = vadd.f32 %v2335, %v2348
      %v2350 = vpop.f32.mrf.mxu0
      %v2351 = vadd.f32 %v2337, %v2350
      %2352 = vdwg.mxu0
      %2353 = vmatpush.bf16.msra.mxu0 %v1908
      %2354 = vmatpush.bf16.msra.mxu0 %v1904
      %2355 = vmatpush.bf16.msra.mxu0 %v1900
      %2356 = vmatpush.bf16.msra.mxu0 %v1896
      %2357 = vmatpush.bf16.msra.mxu0 %v1892
      %2358 = vmatpush.bf16.msra.mxu0 %v1888
      %2359 = vmatpush.bf16.msra.mxu0 %v1884
      %2360 = vmatpush.bf16.msra.mxu0 %v1880
      %2361 = vmatmul.bf16.gmra.mxu0 %v1129
      %v2362 = vpop.f32.mrf.mxu0
      %v2363 = vadd.f32 %v2349, %v2362
      %v2364 = vpop.f32.mrf.mxu0
      %v2365 = vadd.f32 %v2351, %v2364
      %2366 = vdwg.mxu0
      %2367 = vmatpush.bf16.msra.mxu0 %v1940
      %2368 = vmatpush.bf16.msra.mxu0 %v1936
      %2369 = vmatpush.bf16.msra.mxu0 %v1932
      %2370 = vmatpush.bf16.msra.mxu0 %v1928
      %2371 = vmatpush.bf16.msra.mxu0 %v1924
      %2372 = vmatpush.bf16.msra.mxu0 %v1920
      %2373 = vmatpush.bf16.msra.mxu0 %v1916
      %2374 = vmatpush.bf16.msra.mxu0 %v1912
      %2375 = vmatmul.bf16.gmra.mxu0 %v1130
      %v2376 = vpop.f32.mrf.mxu0
      %v2377 = vadd.f32 %v2363, %v2376
      %v2378 = vpop.f32.mrf.mxu0
      %v2379 = vadd.f32 %v2365, %v2378
      %2380 = vdwg.mxu0
      %vm2381 = vcmp.ge.f32.partialorder %v2167, 0.0
      %vm2382 = vcmp.ge.f32.partialorder %v2237, 0.0
      %vm2383 = vcmp.ge.f32.partialorder %v2307, 0.0
      %vm2384 = vcmp.ge.f32.partialorder %v2377, 0.0
      %vm2385 = vcmp.ge.f32.partialorder %v2169, 0.0
      %vm2386 = vcmp.ge.f32.partialorder %v2239, 0.0
      %vm2387 = vcmp.ge.f32.partialorder %v2309, 0.0
      %vm2388 = vcmp.ge.f32.partialorder %v2379, 0.0
      %v2389 = vmul.f32 %v2167, 0.01
      %v2390 = vmul.f32 %v2237, 0.01
      %v2391 = vmul.f32 %v2307, 0.01
      %v2392 = vmul.f32 %v2377, 0.01
      %v2393 = vmul.f32 %v2169, 0.01
      %v2394 = vmul.f32 %v2239, 0.01
      %v2395 = vmul.f32 %v2309, 0.01
      %v2396 = vmul.f32 %v2379, 0.01
      %v2397 = vsel %vm2381, %v2167, %v2389
      %v2398 = vsel %vm2382, %v2237, %v2390
      %v2399 = vsel %vm2383, %v2307, %v2391
      %v2400 = vsel %vm2384, %v2377, %v2392
      %v2401 = vsel %vm2385, %v2169, %v2393
      %v2402 = vsel %vm2386, %v2239, %v2394
      %v2403 = vsel %vm2387, %v2309, %v2395
      %v2404 = vsel %vm2388, %v2379, %v2396
      %v2405 = vpack.c.bf16 %v2401, %v2397
      %v2406 = vpack.c.bf16 %v2402, %v2398
      %v2407 = vpack.c.bf16 %v2403, %v2399
      %v2408 = vpack.c.bf16 %v2404, %v2400
      %v2409 = vld [vmem:[%s5] sm:$0xff]
      %v2410 = vld [vmem:[%s5 + $0x8] sm:$0xff]
      %v2411 = vld [vmem:[%s5 + $0x10] sm:$0xff]
      %v2412 = vld [vmem:[%s5 + $0x18] sm:$0xff]
      %v2413 = vld [vmem:[%s5 + $0x20] sm:$0xff]
      %v2414 = vld [vmem:[%s5 + $0x28] sm:$0xff]
      %v2415 = vld [vmem:[%s5 + $0x30] sm:$0xff]
      %v2416 = vld [vmem:[%s5 + $0x38] sm:$0xff]
      %v2417 = vld [vmem:[%s5 + $0x40] sm:$0xff]
      %v2418 = vld [vmem:[%s5 + $0x48] sm:$0xff]
      %v2419 = vld [vmem:[%s5 + $0x50] sm:$0xff]
      %v2420 = vld [vmem:[%s5 + $0x58] sm:$0xff]
      %v2421 = vld [vmem:[%s5 + $0x60] sm:$0xff]
      %v2422 = vld [vmem:[%s5 + $0x68] sm:$0xff]
      %v2423 = vld [vmem:[%s5 + $0x70] sm:$0xff]
      %v2424 = vld [vmem:[%s5 + $0x78] sm:$0xff]
      %v2425 = vld [vmem:[%s5 + $0x80] sm:$0xff]
      %v2426 = vld [vmem:[%s5 + $0x88] sm:$0xff]
      %v2427 = vld [vmem:[%s5 + $0x90] sm:$0xff]
      %v2428 = vld [vmem:[%s5 + $0x98] sm:$0xff]
      %v2429 = vld [vmem:[%s5 + $0xa0] sm:$0xff]
      %v2430 = vld [vmem:[%s5 + $0xa8] sm:$0xff]
      %v2431 = vld [vmem:[%s5 + $0xb0] sm:$0xff]
      %v2432 = vld [vmem:[%s5 + $0xb8] sm:$0xff]
      %v2433 = vld [vmem:[%s5 + $0xc0] sm:$0xff]
      %v2434 = vld [vmem:[%s5 + $0xc8] sm:$0xff]
      %v2435 = vld [vmem:[%s5 + $0xd0] sm:$0xff]
      %v2436 = vld [vmem:[%s5 + $0xd8] sm:$0xff]
      %v2437 = vld [vmem:[%s5 + $0xe0] sm:$0xff]
      %v2438 = vld [vmem:[%s5 + $0xe8] sm:$0xff]
      %v2439 = vld [vmem:[%s5 + $0xf0] sm:$0xff]
      %v2440 = vld [vmem:[%s5 + $0xf8] sm:$0xff]
      %v2441 = vld [vmem:[%s5 + $0x100] sm:$0xff]
      %v2442 = vld [vmem:[%s5 + $0x108] sm:$0xff]
      %v2443 = vld [vmem:[%s5 + $0x110] sm:$0xff]
      %v2444 = vld [vmem:[%s5 + $0x118] sm:$0xff]
      %v2445 = vld [vmem:[%s5 + $0x120] sm:$0xff]
      %v2446 = vld [vmem:[%s5 + $0x128] sm:$0xff]
      %v2447 = vld [vmem:[%s5 + $0x130] sm:$0xff]
      %v2448 = vld [vmem:[%s5 + $0x138] sm:$0xff]
      %v2449 = vld [vmem:[%s5 + $0x140] sm:$0xff]
      %v2450 = vld [vmem:[%s5 + $0x148] sm:$0xff]
      %v2451 = vld [vmem:[%s5 + $0x150] sm:$0xff]
      %v2452 = vld [vmem:[%s5 + $0x158] sm:$0xff]
      %v2453 = vld [vmem:[%s5 + $0x160] sm:$0xff]
      %v2454 = vld [vmem:[%s5 + $0x168] sm:$0xff]
      %v2455 = vld [vmem:[%s5 + $0x170] sm:$0xff]
      %v2456 = vld [vmem:[%s5 + $0x178] sm:$0xff]
      %v2457 = vld [vmem:[%s5 + $0x180] sm:$0xff]
      %v2458 = vld [vmem:[%s5 + $0x188] sm:$0xff]
      %v2459 = vld [vmem:[%s5 + $0x190] sm:$0xff]
      %v2460 = vld [vmem:[%s5 + $0x198] sm:$0xff]
      %v2461 = vld [vmem:[%s5 + $0x1a0] sm:$0xff]
      %v2462 = vld [vmem:[%s5 + $0x1a8] sm:$0xff]
      %v2463 = vld [vmem:[%s5 + $0x1b0] sm:$0xff]
      %v2464 = vld [vmem:[%s5 + $0x1b8] sm:$0xff]
      %v2465 = vld [vmem:[%s5 + $0x1c0] sm:$0xff]
      %v2466 = vld [vmem:[%s5 + $0x1c8] sm:$0xff]
      %v2467 = vld [vmem:[%s5 + $0x1d0] sm:$0xff]
      %v2468 = vld [vmem:[%s5 + $0x1d8] sm:$0xff]
      %v2469 = vld [vmem:[%s5 + $0x1e0] sm:$0xff]
      %v2470 = vld [vmem:[%s5 + $0x1e8] sm:$0xff]
      %v2471 = vld [vmem:[%s5 + $0x1f0] sm:$0xff]
      %v2472 = vld [vmem:[%s5 + $0x1f8] sm:$0xff]
      %v2473 = vld [vmem:[%s6] sm:$0x3]
      %v2475 = vperm.slane %v2473, 0
      %v2476 = vperm.slane %v2473, 1
      %v2543 = vunpack.c.l.b16 %v2409
      %v2544 = vunpack.c.h.b16 %v2409
      %v2545 = vunpack.c.l.b16 %v2410
      %v2546 = vunpack.c.h.b16 %v2410
      %v2547 = vunpack.c.l.b16 %v2411
      %v2548 = vunpack.c.h.b16 %v2411
      %v2549 = vunpack.c.l.b16 %v2412
      %v2550 = vunpack.c.h.b16 %v2412
      %v2551 = vunpack.c.l.b16 %v2413
      %v2552 = vunpack.c.h.b16 %v2413
      %v2553 = vunpack.c.l.b16 %v2414
      %v2554 = vunpack.c.h.b16 %v2414
      %v2555 = vunpack.c.l.b16 %v2415
      %v2556 = vunpack.c.h.b16 %v2415
      %v2557 = vunpack.c.l.b16 %v2416
      %v2558 = vunpack.c.h.b16 %v2416
      %v2559 = vunpack.c.l.b16 %v2417
      %v2560 = vunpack.c.h.b16 %v2417
      %v2561 = vunpack.c.l.b16 %v2418
      %v2562 = vunpack.c.h.b16 %v2418
      %v2563 = vunpack.c.l.b16 %v2419
      %v2564 = vunpack.c.h.b16 %v2419
      %v2565 = vunpack.c.l.b16 %v2420
      %v2566 = vunpack.c.h.b16 %v2420
      %v2567 = vunpack.c.l.b16 %v2421
      %v2568 = vunpack.c.h.b16 %v2421
      %v2569 = vunpack.c.l.b16 %v2422
      %v2570 = vunpack.c.h.b16 %v2422
      %v2571 = vunpack.c.l.b16 %v2423
      %v2572 = vunpack.c.h.b16 %v2423
      %v2573 = vunpack.c.l.b16 %v2424
      %v2574 = vunpack.c.h.b16 %v2424
      %v2575 = vunpack.c.l.b16 %v2425
      %v2576 = vunpack.c.h.b16 %v2425
      %v2577 = vunpack.c.l.b16 %v2426
      %v2578 = vunpack.c.h.b16 %v2426
      %v2579 = vunpack.c.l.b16 %v2427
      %v2580 = vunpack.c.h.b16 %v2427
      %v2581 = vunpack.c.l.b16 %v2428
      %v2582 = vunpack.c.h.b16 %v2428
      %v2583 = vunpack.c.l.b16 %v2429
      %v2584 = vunpack.c.h.b16 %v2429
      %v2585 = vunpack.c.l.b16 %v2430
      %v2586 = vunpack.c.h.b16 %v2430
      %v2587 = vunpack.c.l.b16 %v2431
      %v2588 = vunpack.c.h.b16 %v2431
      %v2589 = vunpack.c.l.b16 %v2432
      %v2590 = vunpack.c.h.b16 %v2432
      %v2591 = vunpack.c.l.b16 %v2433
      %v2592 = vunpack.c.h.b16 %v2433
      %v2593 = vunpack.c.l.b16 %v2434
      %v2594 = vunpack.c.h.b16 %v2434
      %v2595 = vunpack.c.l.b16 %v2435
      %v2596 = vunpack.c.h.b16 %v2435
      %v2597 = vunpack.c.l.b16 %v2436
      %v2598 = vunpack.c.h.b16 %v2436
      %v2599 = vunpack.c.l.b16 %v2437
      %v2600 = vunpack.c.h.b16 %v2437
      %v2601 = vunpack.c.l.b16 %v2438
      %v2602 = vunpack.c.h.b16 %v2438
      %v2603 = vunpack.c.l.b16 %v2439
      %v2604 = vunpack.c.h.b16 %v2439
      %v2605 = vunpack.c.l.b16 %v2440
      %v2606 = vunpack.c.h.b16 %v2440
      %v2607 = vunpack.c.l.b16 %v2441
      %v2608 = vunpack.c.h.b16 %v2441
      %v2609 = vunpack.c.l.b16 %v2442
      %v2610 = vunpack.c.h.b16 %v2442
      %v2611 = vunpack.c.l.b16 %v2443
      %v2612 = vunpack.c.h.b16 %v2443
      %v2613 = vunpack.c.l.b16 %v2444
      %v2614 = vunpack.c.h.b16 %v2444
      %v2615 = vunpack.c.l.b16 %v2445
      %v2616 = vunpack.c.h.b16 %v2445
      %v2617 = vunpack.c.l.b16 %v2446
      %v2618 = vunpack.c.h.b16 %v2446
      %v2619 = vunpack.c.l.b16 %v2447
      %v2620 = vunpack.c.h.b16 %v2447
      %v2621 = vunpack.c.l.b16 %v2448
      %v2622 = vunpack.c.h.b16 %v2448
      %v2623 = vunpack.c.l.b16 %v2449
      %v2624 = vunpack.c.h.b16 %v2449
      %v2625 = vunpack.c.l.b16 %v2450
      %v2626 = vunpack.c.h.b16 %v2450
      %v2627 = vunpack.c.l.b16 %v2451
      %v2628 = vunpack.c.h.b16 %v2451
      %v2629 = vunpack.c.l.b16 %v2452
      %v2630 = vunpack.c.h.b16 %v2452
      %v2631 = vunpack.c.l.b16 %v2453
      %v2632 = vunpack.c.h.b16 %v2453
      %v2633 = vunpack.c.l.b16 %v2454
      %v2634 = vunpack.c.h.b16 %v2454
      %v2635 = vunpack.c.l.b16 %v2455
      %v2636 = vunpack.c.h.b16 %v2455
      %v2637 = vunpack.c.l.b16 %v2456
      %v2638 = vunpack.c.h.b16 %v2456
      %v2639 = vunpack.c.l.b16 %v2457
      %v2640 = vunpack.c.h.b16 %v2457
      %v2641 = vunpack.c.l.b16 %v2458
      %v2642 = vunpack.c.h.b16 %v2458
      %v2643 = vunpack.c.l.b16 %v2459
      %v2644 = vunpack.c.h.b16 %v2459
      %v2645 = vunpack.c.l.b16 %v2460
      %v2646 = vunpack.c.h.b16 %v2460
      %v2647 = vunpack.c.l.b16 %v2461
      %v2648 = vunpack.c.h.b16 %v2461
      %v2649 = vunpack.c.l.b16 %v2462
      %v2650 = vunpack.c.h.b16 %v2462
      %v2651 = vunpack.c.l.b16 %v2463
      %v2652 = vunpack.c.h.b16 %v2463
      %v2653 = vunpack.c.l.b16 %v2464
      %v2654 = vunpack.c.h.b16 %v2464
      %v2655 = vunpack.c.l.b16 %v2465
      %v2656 = vunpack.c.h.b16 %v2465
      %v2657 = vunpack.c.l.b16 %v2466
      %v2658 = vunpack.c.h.b16 %v2466
      %v2659 = vunpack.c.l.b16 %v2467
      %v2660 = vunpack.c.h.b16 %v2467
      %v2661 = vunpack.c.l.b16 %v2468
      %v2662 = vunpack.c.h.b16 %v2468
      %v2663 = vunpack.c.l.b16 %v2469
      %v2664 = vunpack.c.h.b16 %v2469
      %v2665 = vunpack.c.l.b16 %v2470
      %v2666 = vunpack.c.h.b16 %v2470
      %v2667 = vunpack.c.l.b16 %v2471
      %v2668 = vunpack.c.h.b16 %v2471
      %v2669 = vunpack.c.l.b16 %v2472
      %v2670 = vunpack.c.h.b16 %v2472
      %v2671 = vpack.c.b16 %v2545, %v2543
      %v2672 = vpack.c.b16 %v2546, %v2544
      %v2673 = vpack.c.b16 %v2549, %v2547
      %v2674 = vpack.c.b16 %v2550, %v2548
      %v2675 = vpack.c.b16 %v2553, %v2551
      %v2676 = vpack.c.b16 %v2554, %v2552
      %v2677 = vpack.c.b16 %v2557, %v2555
      %v2678 = vpack.c.b16 %v2558, %v2556
      %v2679 = vpack.c.b16 %v2561, %v2559
      %v2680 = vpack.c.b16 %v2562, %v2560
      %v2681 = vpack.c.b16 %v2565, %v2563
      %v2682 = vpack.c.b16 %v2566, %v2564
      %v2683 = vpack.c.b16 %v2569, %v2567
      %v2684 = vpack.c.b16 %v2570, %v2568
      %v2685 = vpack.c.b16 %v2573, %v2571
      %v2686 = vpack.c.b16 %v2574, %v2572
      %v2687 = vpack.c.b16 %v2577, %v2575
      %v2688 = vpack.c.b16 %v2578, %v2576
      %v2689 = vpack.c.b16 %v2581, %v2579
      %v2690 = vpack.c.b16 %v2582, %v2580
      %v2691 = vpack.c.b16 %v2585, %v2583
      %v2692 = vpack.c.b16 %v2586, %v2584
      %v2693 = vpack.c.b16 %v2589, %v2587
      %v2694 = vpack.c.b16 %v2590, %v2588
      %v2695 = vpack.c.b16 %v2593, %v2591
      %v2696 = vpack.c.b16 %v2594, %v2592
      %v2697 = vpack.c.b16 %v2597, %v2595
      %v2698 = vpack.c.b16 %v2598, %v2596
      %v2699 = vpack.c.b16 %v2601, %v2599
      %v2700 = vpack.c.b16 %v2602, %v2600
      %v2701 = vpack.c.b16 %v2605, %v2603
      %v2702 = vpack.c.b16 %v2606, %v2604
      %v2703 = vpack.c.b16 %v2609, %v2607
      %v2704 = vpack.c.b16 %v2610, %v2608
      %v2705 = vpack.c.b16 %v2613, %v2611
      %v2706 = vpack.c.b16 %v2614, %v2612
      %v2707 = vpack.c.b16 %v2617, %v2615
      %v2708 = vpack.c.b16 %v2618, %v2616
      %v2709 = vpack.c.b16 %v2621, %v2619
      %v2710 = vpack.c.b16 %v2622, %v2620
      %v2711 = vpack.c.b16 %v2625, %v2623
      %v2712 = vpack.c.b16 %v2626, %v2624
      %v2713 = vpack.c.b16 %v2629, %v2627
      %v2714 = vpack.c.b16 %v2630, %v2628
      %v2715 = vpack.c.b16 %v2633, %v2631
      %v2716 = vpack.c.b16 %v2634, %v2632
      %v2717 = vpack.c.b16 %v2637, %v2635
      %v2718 = vpack.c.b16 %v2638, %v2636
      %v2719 = vpack.c.b16 %v2641, %v2639
      %v2720 = vpack.c.b16 %v2642, %v2640
      %v2721 = vpack.c.b16 %v2645, %v2643
      %v2722 = vpack.c.b16 %v2646, %v2644
      %v2723 = vpack.c.b16 %v2649, %v2647
      %v2724 = vpack.c.b16 %v2650, %v2648
      %v2725 = vpack.c.b16 %v2653, %v2651
      %v2726 = vpack.c.b16 %v2654, %v2652
      %v2727 = vpack.c.b16 %v2657, %v2655
      %v2728 = vpack.c.b16 %v2658, %v2656
      %v2729 = vpack.c.b16 %v2661, %v2659
      %v2730 = vpack.c.b16 %v2662, %v2660
      %v2731 = vpack.c.b16 %v2665, %v2663
      %v2732 = vpack.c.b16 %v2666, %v2664
      %v2733 = vpack.c.b16 %v2669, %v2667
      %v2734 = vpack.c.b16 %v2670, %v2668
      %2799 = vmatpush.bf16.msra.mxu0 %v2685
      %2800 = vmatpush.bf16.msra.mxu0 %v2683
      %2801 = vmatpush.bf16.msra.mxu0 %v2681
      %2802 = vmatpush.bf16.msra.mxu0 %v2679
      %2803 = vmatpush.bf16.msra.mxu0 %v2677
      %2804 = vmatpush.bf16.msra.mxu0 %v2675
      %2805 = vmatpush.bf16.msra.mxu0 %v2673
      %2806 = vmatpush.bf16.msra.mxu0 %v2671
      %2807 = vmatmul.bf16.gmra.mxu0 %v2405
      %v2808 = vpop.f32.mrf.mxu0
      %v2809 = vadd.f32 %v2475, %v2808
      %v2810 = vpop.f32.mrf.mxu0
      %v2811 = vadd.f32 %v2475, %v2810
      %2812 = vdwg.mxu0
      %2813 = vmatpush.bf16.msra.mxu0 %v2701
      %2814 = vmatpush.bf16.msra.mxu0 %v2699
      %2815 = vmatpush.bf16.msra.mxu0 %v2697
      %2816 = vmatpush.bf16.msra.mxu0 %v2695
      %2817 = vmatpush.bf16.msra.mxu0 %v2693
      %2818 = vmatpush.bf16.msra.mxu0 %v2691
      %2819 = vmatpush.bf16.msra.mxu0 %v2689
      %2820 = vmatpush.bf16.msra.mxu0 %v2687
      %2821 = vmatmul.bf16.gmra.mxu0 %v2406
      %v2822 = vpop.f32.mrf.mxu0
      %v2823 = vadd.f32 %v2809, %v2822
      %v2824 = vpop.f32.mrf.mxu0
      %v2825 = vadd.f32 %v2811, %v2824
      %2826 = vdwg.mxu0
      %2827 = vmatpush.bf16.msra.mxu0 %v2717
      %2828 = vmatpush.bf16.msra.mxu0 %v2715
      %2829 = vmatpush.bf16.msra.mxu0 %v2713
      %2830 = vmatpush.bf16.msra.mxu0 %v2711
      %2831 = vmatpush.bf16.msra.mxu0 %v2709
      %2832 = vmatpush.bf16.msra.mxu0 %v2707
      %2833 = vmatpush.bf16.msra.mxu0 %v2705
      %2834 = vmatpush.bf16.msra.mxu0 %v2703
      %2835 = vmatmul.bf16.gmra.mxu0 %v2407
      %v2836 = vpop.f32.mrf.mxu0
      %v2837 = vadd.f32 %v2823, %v2836
      %v2838 = vpop.f32.mrf.mxu0
      %v2839 = vadd.f32 %v2825, %v2838
      %2840 = vdwg.mxu0
      %2841 = vmatpush.bf16.msra.mxu0 %v2733
      %2842 = vmatpush.bf16.msra.mxu0 %v2731
      %2843 = vmatpush.bf16.msra.mxu0 %v2729
      %2844 = vmatpush.bf16.msra.mxu0 %v2727
      %2845 = vmatpush.bf16.msra.mxu0 %v2725
      %2846 = vmatpush.bf16.msra.mxu0 %v2723
      %2847 = vmatpush.bf16.msra.mxu0 %v2721
      %2848 = vmatpush.bf16.msra.mxu0 %v2719
      %2849 = vmatmul.bf16.gmra.mxu0 %v2408
      %v2850 = vpop.f32.mrf.mxu0
      %v2851 = vadd.f32 %v2837, %v2850
      %v2852 = vpop.f32.mrf.mxu0
      %v2853 = vadd.f32 %v2839, %v2852
      %2854 = vdwg.mxu0
      %2855 = vmatpush.bf16.msra.mxu0 %v2686
      %2856 = vmatpush.bf16.msra.mxu0 %v2684
      %2857 = vmatpush.bf16.msra.mxu0 %v2682
      %2858 = vmatpush.bf16.msra.mxu0 %v2680
      %2859 = vmatpush.bf16.msra.mxu0 %v2678
      %2860 = vmatpush.bf16.msra.mxu0 %v2676
      %2861 = vmatpush.bf16.msra.mxu0 %v2674
      %2862 = vmatpush.bf16.msra.mxu0 %v2672
      %2863 = vmatmul.bf16.gmra.mxu0 %v2405
      %v2864 = vpop.f32.mrf.mxu0
      %v2865 = vadd.f32 %v2476, %v2864
      %v2866 = vpop.f32.mrf.mxu0
      %v2867 = vadd.f32 %v2476, %v2866
      %2868 = vdwg.mxu0
      %2869 = vmatpush.bf16.msra.mxu0 %v2702
      %2870 = vmatpush.bf16.msra.mxu0 %v2700
      %2871 = vmatpush.bf16.msra.mxu0 %v2698
      %2872 = vmatpush.bf16.msra.mxu0 %v2696
      %2873 = vmatpush.bf16.msra.mxu0 %v2694
      %2874 = vmatpush.bf16.msra.mxu0 %v2692
      %2875 = vmatpush.bf16.msra.mxu0 %v2690
      %2876 = vmatpush.bf16.msra.mxu0 %v2688
      %2877 = vmatmul.bf16.gmra.mxu0 %v2406
      %v2878 = vpop.f32.mrf.mxu0
      %v2879 = vadd.f32 %v2865, %v2878
      %v2880 = vpop.f32.mrf.mxu0
      %v2881 = vadd.f32 %v2867, %v2880
      %2882 = vdwg.mxu0
      %2883 = vmatpush.bf16.msra.mxu0 %v2718
      %2884 = vmatpush.bf16.msra.mxu0 %v2716
      %2885 = vmatpush.bf16.msra.mxu0 %v2714
      %2886 = vmatpush.bf16.msra.mxu0 %v2712
      %2887 = vmatpush.bf16.msra.mxu0 %v2710
      %2888 = vmatpush.bf16.msra.mxu0 %v2708
      %2889 = vmatpush.bf16.msra.mxu0 %v2706
      %2890 = vmatpush.bf16.msra.mxu0 %v2704
      %2891 = vmatmul.bf16.gmra.mxu0 %v2407
      %v2892 = vpop.f32.mrf.mxu0
      %v2893 = vadd.f32 %v2879, %v2892
      %v2894 = vpop.f32.mrf.mxu0
      %v2895 = vadd.f32 %v2881, %v2894
      %2896 = vdwg.mxu0
      %2897 = vmatpush.bf16.msra.mxu0 %v2734
      %2898 = vmatpush.bf16.msra.mxu0 %v2732
      %2899 = vmatpush.bf16.msra.mxu0 %v2730
      %2900 = vmatpush.bf16.msra.mxu0 %v2728
      %2901 = vmatpush.bf16.msra.mxu0 %v2726
      %2902 = vmatpush.bf16.msra.mxu0 %v2724
      %2903 = vmatpush.bf16.msra.mxu0 %v2722
      %2904 = vmatpush.bf16.msra.mxu0 %v2720
      %2905 = vmatmul.bf16.gmra.mxu0 %v2408
      %v2906 = vpop.f32.mrf.mxu0
      %v2907 = vadd.f32 %v2893, %v2906
      %v2908 = vpop.f32.mrf.mxu0
      %v2909 = vadd.f32 %v2895, %v2908
      %2910 = vdwg.mxu0
      %vm2911 = vcmp.ge.f32.partialorder %v2851, 0.0
      %vm2912 = vcmp.ge.f32.partialorder %v2907, 0.0
      %vm2913 = vcmp.ge.f32.partialorder %v2853, 0.0
      %vm2914 = vcmp.ge.f32.partialorder %v2909, 0.0
      %v2915 = vmul.f32 %v2851, 0.01
      %v2916 = vmul.f32 %v2907, 0.01
      %v2917 = vmul.f32 %v2853, 0.01
      %v2918 = vmul.f32 %v2909, 0.01
      %v2919 = vsel %vm2911, %v2851, %v2915
      %v2920 = vsel %vm2912, %v2907, %v2916
      %v2921 = vsel %vm2913, %v2853, %v2917
      %v2922 = vsel %vm2914, %v2909, %v2918
      %v2923 = vpack.c.bf16 %v2921, %v2919
      %v2924 = vpack.c.bf16 %v2922, %v2920
      %v2925 = vld [vmem:[%s7] sm:$0xf]
      %v2926 = vld [vmem:[%s7 + $0x4] sm:$0xf]
      %v2927 = vld [vmem:[%s7 + $0x8] sm:$0xf]
      %v2928 = vld [vmem:[%s7 + $0xc] sm:$0xf]
      %v2929 = vld [vmem:[%s7 + $0x10] sm:$0xf]
      %v2930 = vld [vmem:[%s7 + $0x14] sm:$0xf]
      %v2931 = vld [vmem:[%s7 + $0x18] sm:$0xf]
      %v2932 = vld [vmem:[%s7 + $0x1c] sm:$0xf]
      %v2933 = vld [vmem:[%s7 + $0x20] sm:$0xf]
      %v2934 = vld [vmem:[%s7 + $0x24] sm:$0xf]
      %v2935 = vld [vmem:[%s7 + $0x28] sm:$0xf]
      %v2936 = vld [vmem:[%s7 + $0x2c] sm:$0xf]
      %v2937 = vld [vmem:[%s7 + $0x30] sm:$0xf]
      %v2938 = vld [vmem:[%s7 + $0x34] sm:$0xf]
      %v2939 = vld [vmem:[%s7 + $0x38] sm:$0xf]
      %v2940 = vld [vmem:[%s7 + $0x3c] sm:$0xf]
      %v2941 = vld [vmem:[%s7 + $0x40] sm:$0xf]
      %v2942 = vld [vmem:[%s7 + $0x44] sm:$0xf]
      %v2943 = vld [vmem:[%s7 + $0x48] sm:$0xf]
      %v2944 = vld [vmem:[%s7 + $0x4c] sm:$0xf]
      %v2945 = vld [vmem:[%s7 + $0x50] sm:$0xf]
      %v2946 = vld [vmem:[%s7 + $0x54] sm:$0xf]
      %v2947 = vld [vmem:[%s7 + $0x58] sm:$0xf]
      %v2948 = vld [vmem:[%s7 + $0x5c] sm:$0xf]
      %v2949 = vld [vmem:[%s7 + $0x60] sm:$0xf]
      %v2950 = vld [vmem:[%s7 + $0x64] sm:$0xf]
      %v2951 = vld [vmem:[%s7 + $0x68] sm:$0xf]
      %v2952 = vld [vmem:[%s7 + $0x6c] sm:$0xf]
      %v2953 = vld [vmem:[%s7 + $0x70] sm:$0xf]
      %v2954 = vld [vmem:[%s7 + $0x74] sm:$0xf]
      %v2955 = vld [vmem:[%s7 + $0x78] sm:$0xf]
      %v2956 = vld [vmem:[%s7 + $0x7c] sm:$0xf]
      %v2957 = vld [vmem:[%s8] sm:$0x1]
      %v2959 = vperm.slane %v2957, 0
      %v2993 = vunpack.c.l.b16 %v2925
      %v2994 = vunpack.c.l.b16 %v2926
      %v2995 = vunpack.c.l.b16 %v2927
      %v2996 = vunpack.c.l.b16 %v2928
      %v2997 = vunpack.c.l.b16 %v2929
      %v2998 = vunpack.c.l.b16 %v2930
      %v2999 = vunpack.c.l.b16 %v2931
      %v3000 = vunpack.c.l.b16 %v2932
      %v3001 = vunpack.c.l.b16 %v2933
      %v3002 = vunpack.c.l.b16 %v2934
      %v3003 = vunpack.c.l.b16 %v2935
      %v3004 = vunpack.c.l.b16 %v2936
      %v3005 = vunpack.c.l.b16 %v2937
      %v3006 = vunpack.c.l.b16 %v2938
      %v3007 = vunpack.c.l.b16 %v2939
      %v3008 = vunpack.c.l.b16 %v2940
      %v3009 = vunpack.c.l.b16 %v2941
      %v3010 = vunpack.c.l.b16 %v2942
      %v3011 = vunpack.c.l.b16 %v2943
      %v3012 = vunpack.c.l.b16 %v2944
      %v3013 = vunpack.c.l.b16 %v2945
      %v3014 = vunpack.c.l.b16 %v2946
      %v3015 = vunpack.c.l.b16 %v2947
      %v3016 = vunpack.c.l.b16 %v2948
      %v3017 = vunpack.c.l.b16 %v2949
      %v3018 = vunpack.c.l.b16 %v2950
      %v3019 = vunpack.c.l.b16 %v2951
      %v3020 = vunpack.c.l.b16 %v2952
      %v3021 = vunpack.c.l.b16 %v2953
      %v3022 = vunpack.c.l.b16 %v2954
      %v3023 = vunpack.c.l.b16 %v2955
      %v3024 = vunpack.c.l.b16 %v2956
      %v3025 = vpack.c.b16 %v2994, %v2993
      %v3026 = vpack.c.b16 %v2996, %v2995
      %v3027 = vpack.c.b16 %v2998, %v2997
      %v3028 = vpack.c.b16 %v3000, %v2999
      %v3029 = vpack.c.b16 %v3002, %v3001
      %v3030 = vpack.c.b16 %v3004, %v3003
      %v3031 = vpack.c.b16 %v3006, %v3005
      %v3032 = vpack.c.b16 %v3008, %v3007
      %v3033 = vpack.c.b16 %v3010, %v3009
      %v3034 = vpack.c.b16 %v3012, %v3011
      %v3035 = vpack.c.b16 %v3014, %v3013
      %v3036 = vpack.c.b16 %v3016, %v3015
      %v3037 = vpack.c.b16 %v3018, %v3017
      %v3038 = vpack.c.b16 %v3020, %v3019
      %v3039 = vpack.c.b16 %v3022, %v3021
      %v3040 = vpack.c.b16 %v3024, %v3023
      %3057 = vmatpush.bf16.msra.mxu0 %v3032
      %3058 = vmatpush.bf16.msra.mxu0 %v3031
      %3059 = vmatpush.bf16.msra.mxu0 %v3030
      %3060 = vmatpush.bf16.msra.mxu0 %v3029
      %3061 = vmatpush.bf16.msra.mxu0 %v3028
      %3062 = vmatpush.bf16.msra.mxu0 %v3027
      %3063 = vmatpush.bf16.msra.mxu0 %v3026
      %3064 = vmatpush.bf16.msra.mxu0 %v3025
      %3065 = vmatmul.bf16.gmra.mxu0 %v2923
      %v3066 = vpop.f32.mrf.mxu0
      %v3067 = vadd.f32 %v2959, %v3066
      %v3068 = vpop.f32.mrf.mxu0
      %v3069 = vadd.f32 %v2959, %v3068
      %3070 = vdwg.mxu0
      %3071 = vmatpush.bf16.msra.mxu0 %v3040
      %3072 = vmatpush.bf16.msra.mxu0 %v3039
      %3073 = vmatpush.bf16.msra.mxu0 %v3038
      %3074 = vmatpush.bf16.msra.mxu0 %v3037
      %3075 = vmatpush.bf16.msra.mxu0 %v3036
      %3076 = vmatpush.bf16.msra.mxu0 %v3035
      %3077 = vmatpush.bf16.msra.mxu0 %v3034
      %3078 = vmatpush.bf16.msra.mxu0 %v3033
      %3079 = vmatmul.bf16.gmra.mxu0 %v2924
      %v3080 = vpop.f32.mrf.mxu0
      %v3081 = vadd.f32 %v3067, %v3080
      %v3082 = vpop.f32.mrf.mxu0
      %v3083 = vadd.f32 %v3069, %v3082
      %3084 = vdwg.mxu0
      %vm3085 = vcmp.ge.f32.partialorder %v3081, 0.0
      %vm3086 = vcmp.ge.f32.partialorder %v3083, 0.0
      %v3087 = vmul.f32 %v3081, 0.01
      %v3088 = vmul.f32 %v3083, 0.01
      %v3089 = vsel %vm3085, %v3081, %v3087
      %v3090 = vsel %vm3086, %v3083, %v3088
      %v3091 = vpack.c.bf16 %v3090, %v3089
      %v3092 = vld [vmem:[%s9] sm:$0xf]
      %v3093 = vld [vmem:[%s9 + $0x4] sm:$0xf]
      %v3094 = vld [vmem:[%s9 + $0x8] sm:$0xf]
      %v3095 = vld [vmem:[%s9 + $0xc] sm:$0xf]
      %v3096 = vld [vmem:[%s9 + $0x10] sm:$0xf]
      %v3097 = vld [vmem:[%s9 + $0x14] sm:$0xf]
      %v3098 = vld [vmem:[%s9 + $0x18] sm:$0xf]
      %v3099 = vld [vmem:[%s9 + $0x1c] sm:$0xf]
      %v3100 = vld [vmem:[%s9 + $0x20] sm:$0xf]
      %v3101 = vld [vmem:[%s9 + $0x24] sm:$0xf]
      %v3102 = vld [vmem:[%s9 + $0x28] sm:$0xf]
      %v3103 = vld [vmem:[%s9 + $0x2c] sm:$0xf]
      %v3104 = vld [vmem:[%s9 + $0x30] sm:$0xf]
      %v3105 = vld [vmem:[%s9 + $0x34] sm:$0xf]
      %v3106 = vld [vmem:[%s9 + $0x38] sm:$0xf]
      %v3107 = vld [vmem:[%s9 + $0x3c] sm:$0xf]
      %v3108 = vld [vmem:[%s10] sm:$0x1]
      %v3110 = vperm.slane %v3108, 0
      %v3128 = vunpack.c.l.b16 %v3092
      %v3129 = vunpack.c.l.b16 %v3093
      %v3130 = vunpack.c.l.b16 %v3094
      %v3131 = vunpack.c.l.b16 %v3095
      %v3132 = vunpack.c.l.b16 %v3096
      %v3133 = vunpack.c.l.b16 %v3097
      %v3134 = vunpack.c.l.b16 %v3098
      %v3135 = vunpack.c.l.b16 %v3099
      %v3136 = vunpack.c.l.b16 %v3100
      %v3137 = vunpack.c.l.b16 %v3101
      %v3138 = vunpack.c.l.b16 %v3102
      %v3139 = vunpack.c.l.b16 %v3103
      %v3140 = vunpack.c.l.b16 %v3104
      %v3141 = vunpack.c.l.b16 %v3105
      %v3142 = vunpack.c.l.b16 %v3106
      %v3143 = vunpack.c.l.b16 %v3107
      %v3144 = vpack.c.b16 %v3129, %v3128
      %v3145 = vpack.c.b16 %v3131, %v3130
      %v3146 = vpack.c.b16 %v3133, %v3132
      %v3147 = vpack.c.b16 %v3135, %v3134
      %v3148 = vpack.c.b16 %v3137, %v3136
      %v3149 = vpack.c.b16 %v3139, %v3138
      %v3150 = vpack.c.b16 %v3141, %v3140
      %v3151 = vpack.c.b16 %v3143, %v3142
      %3160 = vmatpush.bf16.msra.mxu0 %v3151
      %3161 = vmatpush.bf16.msra.mxu0 %v3150
      %3162 = vmatpush.bf16.msra.mxu0 %v3149
      %3163 = vmatpush.bf16.msra.mxu0 %v3148
      %3164 = vmatpush.bf16.msra.mxu0 %v3147
      %3165 = vmatpush.bf16.msra.mxu0 %v3146
      %3166 = vmatpush.bf16.msra.mxu0 %v3145
      %3167 = vmatpush.bf16.msra.mxu0 %v3144
      %3168 = vmatmul.bf16.gmra.mxu0 %v3091
      %v3169 = vpop.f32.mrf.mxu0
      %v3170 = vadd.f32 %v3110, %v3169
      %v3171 = vpop.f32.mrf.mxu0
      %v3172 = vadd.f32 %v3110, %v3171
      %3173 = vdwg.mxu0
      %3174 = vmax.xlane.f32.xlu0 %v3170
      %v3175 = vpop.xlane.xlu0 %3174
      %3176 = vmax.xlane.f32.xlu0 %v3172
      %v3177 = vpop.xlane.xlu0 %3176
      %v3178 = vsub.f32 %v3170, %v3175
      %v3179 = vsub.f32 %v3172, %v3177
      %v3180 = vmul.f32 %v3178, 1.442695
      %v3181 = vpow.pop %v3180
      %v3182 = vmul.f32 %v3179, 1.442695
      %v3183 = vpow.pop %v3182
      %v3184 = vpack.c.bf16 %v3183, %v3181
      %v3185 = vld [vmem:[%s11] sm:$0xf]
      %v3186 = vld [vmem:[%s11 + $0x4] sm:$0xf]
      %v3187 = vld [vmem:[%s11 + $0x8] sm:$0xf]
      %v3188 = vld [vmem:[%s11 + $0xc] sm:$0xf]
      %v3189 = vld [vmem:[%s11 + $0x10] sm:$0xf]
      %v3190 = vld [vmem:[%s11 + $0x14] sm:$0xf]
      %v3191 = vld [vmem:[%s11 + $0x18] sm:$0xf]
      %v3192 = vld [vmem:[%s11 + $0x1c] sm:$0xf]
      %v3193 = vld [vmem:[%s11 + $0x20] sm:$0xf]
      %v3194 = vld [vmem:[%s11 + $0x24] sm:$0xf]
      %v3195 = vld [vmem:[%s11 + $0x28] sm:$0xf]
      %v3196 = vld [vmem:[%s11 + $0x2c] sm:$0xf]
      %v3197 = vld [vmem:[%s11 + $0x30] sm:$0xf]
      %v3198 = vld [vmem:[%s11 + $0x34] sm:$0xf]
      %v3199 = vld [vmem:[%s11 + $0x38] sm:$0xf]
      %v3200 = vld [vmem:[%s11 + $0x3c] sm:$0xf]
      %v3217 = vunpack.c.l.b16 %v3185
      %v3218 = vunpack.c.l.b16 %v3186
      %v3219 = vunpack.c.l.b16 %v3187
      %v3220 = vunpack.c.l.b16 %v3188
      %v3221 = vunpack.c.l.b16 %v3189
      %v3222 = vunpack.c.l.b16 %v3190
      %v3223 = vunpack.c.l.b16 %v3191
      %v3224 = vunpack.c.l.b16 %v3192
      %v3225 = vunpack.c.l.b16 %v3193
      %v3226 = vunpack.c.l.b16 %v3194
      %v3227 = vunpack.c.l.b16 %v3195
      %v3228 = vunpack.c.l.b16 %v3196
      %v3229 = vunpack.c.l.b16 %v3197
      %v3230 = vunpack.c.l.b16 %v3198
      %v3231 = vunpack.c.l.b16 %v3199
      %v3232 = vunpack.c.l.b16 %v3200
      %v3233 = vpack.c.b16 %v3218, %v3217
      %v3234 = vpack.c.b16 %v3220, %v3219
      %v3235 = vpack.c.b16 %v3222, %v3221
      %v3236 = vpack.c.b16 %v3224, %v3223
      %v3237 = vpack.c.b16 %v3226, %v3225
      %v3238 = vpack.c.b16 %v3228, %v3227
      %v3239 = vpack.c.b16 %v3230, %v3229
      %v3240 = vpack.c.b16 %v3232, %v3231
      %3249 = vmatpush.bf16.msra.mxu0 %v3240
      %3250 = vmatpush.bf16.msra.mxu0 %v3239
      %3251 = vmatpush.bf16.msra.mxu0 %v3238
      %3252 = vmatpush.bf16.msra.mxu0 %v3237
      %3253 = vmatpush.bf16.msra.mxu0 %v3236
      %3254 = vmatpush.bf16.msra.mxu0 %v3235
      %3255 = vmatpush.bf16.msra.mxu0 %v3234
      %3256 = vmatpush.bf16.msra.mxu0 %v3233
      %3257 = vmatmul.bf16.gmra.mxu0 %v3184
      %v3258 = vpop.f32.mrf.mxu0
      %v3259 = vadd.f32 0.0, %v3258
      %v3260 = vpop.f32.mrf.mxu0
      %v3261 = vadd.f32 0.0, %v3260
      %3262 = vdwg.mxu0
      %v3263 = vrcp.pop %v3259
      %v3264 = vrcp.pop %v3261
      %v3265 = vmul.f32 %v3181, %v3263
      %v3266 = vmul.f32 %v3183, %v3264
      %3267 = vst [vmem:[%s418] sm:$0xff] %v3265
      %3268 = vst [vmem:[%s418 + $0x8] sm:$0xff] %v3266
      %s3269 = smul.u32 2, %s23
      %p3270 = scmp.lt.s32.totalorder %s3269, 3
      %s3271 = scalar_select %p3270, %s3269, 3
      %s3272 = smul.addr %s3271, 8
      %s3273 = scalar_lea.vmem %s12, %s3272
      // Predicated region
      $region69: #{mlp_forward.1} parent=67 // pred_check
        %p3274 = pneg %p298
      $region70: #{mlp_forward.1} parent=67 // pred_check_branch
        %3276 = sbr.rel (%p3274) target = $region72
      $region71: #{mlp_forward.1} parent=67 // pred_region
        %s3277 = smul.u32 2, %s23
      $region72: #{mlp_forward.1} parent=67 // pred_fallthru
        _
    $region68: #{mlp_forward.1} parent=5 // pred_fallthru
      _
    %p3278 = scmp.le.s32.totalorder 2, %s18
    // Predicated region
    $region73: #{mlp_forward.1} parent=5 // pred_check
      %p3279 = pneg %p3278
    $region74: #{mlp_forward.1} parent=5 // pred_check_branch
      %3281 = sbr.rel (%p3279) target = $region76
    $region75: #{mlp_forward.1} parent=5 // pred_region
      %s3282 = ssub.s32 %s18, 2
      // Predicated region
      $region77: #{mlp_forward.1} parent=75 // pred_check
        %p3283 = pneg %p304
      $region78: #{mlp_forward.1} parent=75 // pred_check_branch
        %3285 = sbr.rel (%p3283) target = $region80
      $region79: #{mlp_forward.1} parent=75 // pred_region
        %s3286 = smul.u32 2, %s24
        %p3287 = scmp.lt.s32.totalorder %s3286, 3
        %s3288 = scalar_select %p3287, %s3286, 3
        %s3289 = smul.addr %s3288, 8
        %s3290 = scalar_lea.vmem %s12, %s3289
      $region80: #{mlp_forward.1} parent=75 // pred_fallthru
        _
    $region76: #{mlp_forward.1} parent=5 // pred_fallthru
      _
  $region6: #{mlp_forward.1} parent=0 // loop_footer
    %s22 = sadd.s32 1, %s18
  $region7: #{mlp_forward.1} parent=0 // loop_footer_branch
    %17 = sbr.rel target = $region3
  $region8: #{mlp_forward.1} parent=0 // loop_exit
    _

</llo_original>
